<compile_context>
chip_gen: v7x
topology: tpu7x:2x2x1
jax: 0.10.0
libtpu: 0.0.40
codegen_flags: <defaults>
</compile_context>

<pallas_src>
import functools

import jax
import jax.numpy as jnp
import numpy as np
from jax import lax
from jax.experimental import pallas as pl
from jax.experimental.pallas import tpu as pltpu


def gmm_kernel(xp_ref, w3_ref, b3_ref, w5_ref, b5_ref, w7_ref, b7_ref,
               wb_ref, brow_ref, out_ref, kp_ref, *, H, W, C, O, mxu_dtype):
    # xp_ref  : (H+6, (W+8)*C)      zero-padded input, W/C folded into lanes
    # w3/5/7  : (K*K, (W+2)*C)      depthwise taps, pre-tiled over W+2 pixels
    # b3/5/7  : (1, (W+2)*C)        depthwise biases, pre-tiled
    # wb_ref  : (3, (W+2)*C, 2*W*O) banded dense-conv weights (c1 | c2 lanes)
    # brow_ref: (1, 2*W*O)          dense biases, tiled over W (b1 | b2)
    # out_ref : (H, W*O)            lane-dense output slab
    # kp_ref  : (H+2, (W+2)*C)      VMEM scratch: k with a zero ROW halo
    WL = (W + 2) * C
    WO = W * O

    # ---- fused depthwise 3x3/5x5/7x7: one 7x7 shift-and-FMA tap loop (f32) --
    w3 = w3_ref[...]                       # hoisted out of the tap loop
    w5 = w5_ref[...]
    w7 = w7_ref[...]

    acc3 = jnp.zeros((H, WL), jnp.float32)
    acc5 = jnp.zeros((H, WL), jnp.float32)
    acc7 = jnp.zeros((H, WL), jnp.float32)
    for i in range(7):
        for j in range(7):
            # lane-contiguous shifted window of the folded xp tile
            patch = xp_ref[i:i + H, j * C:j * C + WL]
            t7 = i * 7 + j
            acc7 = acc7 + patch * w7[t7:t7 + 1, :]
            if 1 <= i <= 5 and 1 <= j <= 5:
                t5 = (i - 1) * 5 + (j - 1)
                acc5 = acc5 + patch * w5[t5:t5 + 1, :]
            if 2 <= i <= 4 and 2 <= j <= 4:
                t3 = (i - 2) * 3 + (j - 2)
                acc3 = acc3 + patch * w3[t3:t3 + 1, :]

    x = xp_ref[3:3 + H, 3 * C:3 * C + WL]  # interior (plus 1px column halo)
    k = (jnp.maximum(acc3 + b3_ref[...], 0.0)
         + jnp.maximum(acc5 + b5_ref[...], 0.0)
         + jnp.maximum(acc7 + b7_ref[...], 0.0)
         + x)

    # ---- k with a zero ROW halo only.  Column-halo lanes hold (finite) junk;
    # the matching Wband rows are exact zeros, so no masked column stores.
    zrow = jnp.zeros((1, WL), jnp.float32)
    kp_ref[0:1, :] = zrow
    kp_ref[H + 1:H + 2, :] = zrow
    kp_ref[1:H + 1, :] = k

    # ---- dense 3x3 convs: three banded matmuls, f32 accumulation ------------
    acc = jnp.broadcast_to(brow_ref[...], (H, 2 * WO))        # bias, hoisted
    for dy in range(3):
        acc = acc + jnp.dot(kp_ref[dy:dy + H, :].astype(mxu_dtype), wb_ref[dy],
                            preferred_element_type=jnp.float32)

    c1 = jnp.maximum(acc[:, :WO], 0.0)     # vreg-aligned split (WO == 128 here)
    c2 = jax.nn.sigmoid(acc[:, WO:])
    out_ref[...] = c1 * c2                 # single unmasked lane-dense store


def _tile_rows(w, reps):
    """(T, C) -> (T, reps*C): each row repeated across the folded pixels."""
    T, C = w.shape
    return jnp.tile(w[:, None, :], (1, reps, 1)).reshape(T, reps * C)


def _build_band(wc, W, C, O):
    """wc: (3,3,C,O) HWIO dense-conv weight -> (3, (W+2)*C, W*O) banded matrix.

    band[dy, wp*C + c, w*O + o] = wc[dy, wp - w, c, o]  for 0 <= wp - w <= 2;
    the two halo pixel-row blocks (wp == 0, wp == W+1) are forced to zero so
    junk in the kp column halo never reaches the output.
    """
    bands = []
    for dy in range(3):
        acc = jnp.zeros((W + 2, C, W, O), jnp.float32)
        for dx in range(3):
            sel = jnp.eye(W + 2, W, k=-dx, dtype=jnp.float32)  # sel[wp,w]=1 iff wp==w+dx
            acc = acc + jnp.einsum('pw,co->pcwo', sel, wc[dy, dx])
        bands.append(acc.reshape((W + 2) * C, W * O))
    band = jnp.stack(bands)
    band = band.at[:, :C, :].set(0.0)
    band = band.at[:, (W + 1) * C:, :].set(0.0)
    return band


def gmm_forward(x_nchw, params, *, mxu_dtype=jnp.bfloat16):
    """x_nchw: (N, C, H, W) float32 -> (N, O, H, W) float32."""
    x = jnp.transpose(x_nchw, (0, 2, 3, 1)).astype(jnp.float32)   # NHWC
    N, H, W, C = x.shape
    O = params["w1"].shape[-1]
    WL = (W + 2) * C
    WO = W * O

    # pad 3 rows (7x7 halo) and 4 columns (7x7 halo + 1 so the k column-halo
    # positions are computable in-bounds), then fold W and C into the lane dim
    xp = jnp.pad(x, ((0, 0), (3, 3), (4, 4), (0, 0))).reshape(N, H + 6, (W + 8) * C)

    # depthwise weights / biases pre-tiled over the W+2 folded pixels
    w3t = _tile_rows(params["w3"].reshape(9, C), W + 2)
    w5t = _tile_rows(params["w5"].reshape(25, C), W + 2)
    w7t = _tile_rows(params["w7"].reshape(49, C), W + 2)
    b3t = _tile_rows(params["b3"].reshape(1, C), W + 2)
    b5t = _tile_rows(params["b5"].reshape(1, C), W + 2)
    b7t = _tile_rows(params["b7"].reshape(1, C), W + 2)

    # dense 3x3 convs as banded matmul weights; c1 | c2 stacked on lanes
    wband = jnp.concatenate([_build_band(params["w1"], W, C, O),
                             _build_band(params["w2"], W, C, O)],
                            axis=-1).astype(mxu_dtype)            # (3, WL, 2*WO)
    brow = jnp.concatenate([jnp.tile(params["b1"], W),
                            jnp.tile(params["b2"], W)]).reshape(1, 2 * WO)

    args = (xp, w3t, b3t, w5t, b5t, w7t, b7t, wband, brow)

    flops = (2 * N * H * (W + 2) * C * (9 + 25 + 49)          # depthwise
             + 2 * N * 3 * H * WL * 2 * WO)                    # banded matmuls
    bytes_accessed = int(
        4 * (xp.size + w3t.size + w5t.size + w7t.size + b3t.size + b5t.size
             + b7t.size + brow.size + N * H * WO)
        + jnp.dtype(mxu_dtype).itemsize * wband.size)

    kernel = functools.partial(gmm_kernel, H=H, W=W, C=C, O=O,
                               mxu_dtype=mxu_dtype)
    out_slab = pl.pallas_call(
        kernel,
        out_shape=jax.ShapeDtypeStruct((N, H, WO), jnp.float32),
        grid=(N,),
        in_specs=[
            # padded + folded input: one image per grid step (batch squeezed)
            pl.BlockSpec((None, H + 6, (W + 8) * C), lambda n: (n, 0, 0)),
            # weights / biases: full arrays, resident across the grid
            pl.BlockSpec((9, WL),  lambda n: (0, 0)),
            pl.BlockSpec((1, WL),  lambda n: (0, 0)),
            pl.BlockSpec((25, WL), lambda n: (0, 0)),
            pl.BlockSpec((1, WL),  lambda n: (0, 0)),
            pl.BlockSpec((49, WL), lambda n: (0, 0)),
            pl.BlockSpec((1, WL),  lambda n: (0, 0)),
            pl.BlockSpec((3, WL, 2 * WO), lambda n: (0, 0, 0)),
            pl.BlockSpec((1, 2 * WO),     lambda n: (0, 0)),
        ],
        out_specs=pl.BlockSpec((None, H, WO), lambda n: (n, 0, 0)),
        scratch_shapes=[pltpu.VMEM((H + 2, WL), jnp.float32)],
        compiler_params=pltpu.CompilerParams(
            # images are independent -> shard across v7x TensorCores; on
            # v5e/v6e the N sequential steps auto double-buffer the DMAs.
            dimension_semantics=("parallel",),
            # folded layout => padded VMEM footprint ~= logical size; well
            # under the v7x 64 MiB (and v5e/v6e 128 MiB) budget at this shape.
            vmem_limit_bytes=32 * 1024 * 1024),
        cost_estimate=pl.CostEstimate(
            flops=flops,
            transcendentals=N * H * W * O,
            bytes_accessed=bytes_accessed),
    )(*args)

    out_nhwc = out_slab.reshape(N, H, W, O)
    return jnp.transpose(out_nhwc, (0, 3, 1, 2))                  # back to NCHW


def init_params(key, inc, outc):
    """Deterministic PyTorch-like (kaiming-uniform-ish) init, HWC / HWIO layout."""
    ks = jax.random.split(key, 10)

    def u(k, shape, fan_in):
        bound = 1.0 / np.sqrt(fan_in)
        return jax.random.uniform(k, shape, jnp.float32, -bound, bound)

    return {
        # depthwise (groups=inc): fan_in = K*K, weight stored as (K, K, C)
        "w3": u(ks[0], (3, 3, inc), 9),   "b3": u(ks[1], (inc,), 9),
        "w5": u(ks[2], (5, 5, inc), 25),  "b5": u(ks[3], (inc,), 25),
        "w7": u(ks[4], (7, 7, inc), 49),  "b7": u(ks[5], (inc,), 49),
        # dense 3x3 convs: fan_in = inc*9, weight stored HWIO (3, 3, inc, outc)
        "w1": u(ks[6], (3, 3, inc, outc), inc * 9), "b1": u(ks[7], (outc,), inc * 9),
        "w2": u(ks[8], (3, 3, inc, outc), inc * 9), "b2": u(ks[9], (outc,), inc * 9),
    }


def gmm_ref(x_nchw, params):
    """Pure-JAX reference (lax.conv, full f32 precision) for correctness checks."""
    x = jnp.transpose(x_nchw, (0, 2, 3, 1)).astype(jnp.float32)
    C = x.shape[-1]
    dn = ("NHWC", "HWIO", "NHWC")
    prec = lax.Precision.HIGHEST

    def dw(xin, w, b, K):
        rhs = w.reshape(K, K, 1, C)
        y = lax.conv_general_dilated(xin, rhs, (1, 1), [(K // 2, K // 2)] * 2,
                                     dimension_numbers=dn,
                                     feature_group_count=C, precision=prec)
        return jax.nn.relu(y + b)

    k = (dw(x, params["w3"], params["b3"], 3)
         + dw(x, params["w5"], params["b5"], 5)
         + dw(x, params["w7"], params["b7"], 7)
         + x)

    def dense(kin, w, b):
        return lax.conv_general_dilated(kin, w, (1, 1), [(1, 1), (1, 1)],
                                        dimension_numbers=dn, precision=prec) + b

    c1 = jax.nn.relu(dense(k, params["w1"], params["b1"]))
    c2 = jax.nn.sigmoid(dense(k, params["w2"], params["b2"]))
    return jnp.transpose(c1 * c2, (0, 3, 1, 2))


if __name__ == "__main__":
    inc, outc = 4, 8
    N, H, W = 2, 16, 16

    key = jax.random.PRNGKey(0)
    kx, kparam = jax.random.split(key)
    x = jax.random.normal(kx, (N, inc, H, W), jnp.float32)
    params = init_params(kparam, inc, outc)

    ref = jax.block_until_ready(gmm_ref(x, params))

    # default path: bf16 MXU operands, f32 accumulation (fast on v6e/v7x MXU)
    out_bf16 = jax.block_until_ready(gmm_forward(x, params))
    assert out_bf16.shape == (N, outc, H, W), out_bf16.shape
    np.testing.assert_allclose(np.asarray(out_bf16), np.asarray(ref),
                               rtol=2e-2, atol=2e-2)

    # strict-precision path: f32 MXU operands, checked at 1e-3
    out_f32 = jax.block_until_ready(gmm_forward(x, params,
                                                mxu_dtype=jnp.float32))
    np.testing.assert_allclose(np.asarray(out_f32), np.asarray(ref),
                               rtol=1e-3, atol=1e-3)

    print("KERNEL_OK")
</pallas_src>

<mosaic_0001>
module attributes {stable_mosaic.version = 11 : i64} {
  func.func @gmm_kernel(%arg0: i32, %arg1: memref<1x22x96xf32, #tpu.memory_space<vmem>>, %arg2: memref<9x72xf32, #tpu.memory_space<vmem>>, %arg3: memref<1x72xf32, #tpu.memory_space<vmem>>, %arg4: memref<25x72xf32, #tpu.memory_space<vmem>>, %arg5: memref<1x72xf32, #tpu.memory_space<vmem>>, %arg6: memref<49x72xf32, #tpu.memory_space<vmem>>, %arg7: memref<1x72xf32, #tpu.memory_space<vmem>>, %arg8: memref<3x72x256xbf16, #tpu.memory_space<vmem>>, %arg9: memref<1x256xf32, #tpu.memory_space<vmem>>, %arg10: memref<1x16x128xf32, #tpu.memory_space<vmem>>, %arg11: memref<18x72xf32, #tpu.memory_space<vmem>>) attributes {dimension_semantics = [#tpu.dimension_semantics<parallel>], iteration_bounds = array<i64: 2>, scalar_prefetch = 0 : i64, scratch_operands = 1 : i64, tpu.core_type = #tpu.core_type<tc>, window_params = [{transform_indices = @transform_0, window_bounds = array<i64: 1, 22, 96>}, {pipeline_mode = #tpu.pipeline_mode<synchronous>, transform_indices = @transform_1, window_bounds = array<i64: 9, 72>}, {pipeline_mode = #tpu.pipeline_mode<synchronous>, transform_indices = @transform_2, window_bounds = array<i64: 1, 72>}, {pipeline_mode = #tpu.pipeline_mode<synchronous>, transform_indices = @transform_3, window_bounds = array<i64: 25, 72>}, {pipeline_mode = #tpu.pipeline_mode<synchronous>, transform_indices = @transform_4, window_bounds = array<i64: 1, 72>}, {pipeline_mode = #tpu.pipeline_mode<synchronous>, transform_indices = @transform_5, window_bounds = array<i64: 49, 72>}, {pipeline_mode = #tpu.pipeline_mode<synchronous>, transform_indices = @transform_6, window_bounds = array<i64: 1, 72>}, {pipeline_mode = #tpu.pipeline_mode<synchronous>, transform_indices = @transform_7, window_bounds = array<i64: 3, 72, 256>}, {pipeline_mode = #tpu.pipeline_mode<synchronous>, transform_indices = @transform_8, window_bounds = array<i64: 1, 256>}, {transform_indices = @transform_9, window_bounds = array<i64: 1, 16, 128>}]} {
    %c0 = arith.constant 0 : index
    %c0_0 = arith.constant 0 : index
    %0 = vector.load %arg2[%c0, %c0_0] : memref<9x72xf32, #tpu.memory_space<vmem>>, vector<9x72xf32>
    %c0_1 = arith.constant 0 : index
    %c0_2 = arith.constant 0 : index
    %1 = vector.load %arg4[%c0_1, %c0_2] : memref<25x72xf32, #tpu.memory_space<vmem>>, vector<25x72xf32>
    %c0_3 = arith.constant 0 : index
    %c0_4 = arith.constant 0 : index
    %2 = vector.load %arg6[%c0_3, %c0_4] : memref<49x72xf32, #tpu.memory_space<vmem>>, vector<49x72xf32>
    %cst = arith.constant 0.000000e+00 : f32
    %3 = vector.broadcast %cst : f32 to vector<16x72xf32>
    %cst_5 = arith.constant 0.000000e+00 : f32
    %4 = vector.broadcast %cst_5 : f32 to vector<16x72xf32>
    %cst_6 = arith.constant 0.000000e+00 : f32
    %5 = vector.broadcast %cst_6 : f32 to vector<16x72xf32>
    %c0_7 = arith.constant 0 : index
    %c0_8 = arith.constant 0 : index
    %c0_9 = arith.constant 0 : index
    %6 = vector.load %arg1[%c0_7, %c0_8, %c0_9] : memref<1x22x96xf32, #tpu.memory_space<vmem>>, vector<1x16x72xf32>
    %7 = vector.shape_cast %6 : vector<1x16x72xf32> to vector<16x72xf32>
    %8 = vector.extract_strided_slice %2 {offsets = [0, 0], sizes = [1, 72], strides = [1, 1]} : vector<49x72xf32> to vector<1x72xf32>
    %9 = vector.broadcast %8 : vector<1x72xf32> to vector<16x72xf32>
    %10 = arith.mulf %7, %9 : vector<16x72xf32>
    %11 = arith.addf %5, %10 : vector<16x72xf32>
    %c0_10 = arith.constant 0 : index
    %c0_11 = arith.constant 0 : index
    %c4 = arith.constant 4 : index
    %12 = vector.load %arg1[%c0_10, %c0_11, %c4] : memref<1x22x96xf32, #tpu.memory_space<vmem>>, vector<1x16x72xf32>
    %13 = vector.shape_cast %12 : vector<1x16x72xf32> to vector<16x72xf32>
    %14 = vector.extract_strided_slice %2 {offsets = [1, 0], sizes = [1, 72], strides = [1, 1]} : vector<49x72xf32> to vector<1x72xf32>
    %15 = vector.broadcast %14 : vector<1x72xf32> to vector<16x72xf32>
    %16 = arith.mulf %13, %15 : vector<16x72xf32>
    %17 = arith.addf %11, %16 : vector<16x72xf32>
    %c0_12 = arith.constant 0 : index
    %c0_13 = arith.constant 0 : index
    %c8 = arith.constant 8 : index
    %18 = vector.load %arg1[%c0_12, %c0_13, %c8] : memref<1x22x96xf32, #tpu.memory_space<vmem>>, vector<1x16x72xf32>
    %19 = vector.shape_cast %18 : vector<1x16x72xf32> to vector<16x72xf32>
    %20 = vector.extract_strided_slice %2 {offsets = [2, 0], sizes = [1, 72], strides = [1, 1]} : vector<49x72xf32> to vector<1x72xf32>
    %21 = vector.broadcast %20 : vector<1x72xf32> to vector<16x72xf32>
    %22 = arith.mulf %19, %21 : vector<16x72xf32>
    %23 = arith.addf %17, %22 : vector<16x72xf32>
    %c0_14 = arith.constant 0 : index
    %c0_15 = arith.constant 0 : index
    %c12 = arith.constant 12 : index
    %24 = vector.load %arg1[%c0_14, %c0_15, %c12] : memref<1x22x96xf32, #tpu.memory_space<vmem>>, vector<1x16x72xf32>
    %25 = vector.shape_cast %24 : vector<1x16x72xf32> to vector<16x72xf32>
    %26 = vector.extract_strided_slice %2 {offsets = [3, 0], sizes = [1, 72], strides = [1, 1]} : vector<49x72xf32> to vector<1x72xf32>
    %27 = vector.broadcast %26 : vector<1x72xf32> to vector<16x72xf32>
    %28 = arith.mulf %25, %27 : vector<16x72xf32>
    %29 = arith.addf %23, %28 : vector<16x72xf32>
    %c0_16 = arith.constant 0 : index
    %c0_17 = arith.constant 0 : index
    %c16 = arith.constant 16 : index
    %30 = vector.load %arg1[%c0_16, %c0_17, %c16] : memref<1x22x96xf32, #tpu.memory_space<vmem>>, vector<1x16x72xf32>
    %31 = vector.shape_cast %30 : vector<1x16x72xf32> to vector<16x72xf32>
    %32 = vector.extract_strided_slice %2 {offsets = [4, 0], sizes = [1, 72], strides = [1, 1]} : vector<49x72xf32> to vector<1x72xf32>
    %33 = vector.broadcast %32 : vector<1x72xf32> to vector<16x72xf32>
    %34 = arith.mulf %31, %33 : vector<16x72xf32>
    %35 = arith.addf %29, %34 : vector<16x72xf32>
    %c0_18 = arith.constant 0 : index
    %c0_19 = arith.constant 0 : index
    %c20 = arith.constant 20 : index
    %36 = vector.load %arg1[%c0_18, %c0_19, %c20] : memref<1x22x96xf32, #tpu.memory_space<vmem>>, vector<1x16x72xf32>
    %37 = vector.shape_cast %36 : vector<1x16x72xf32> to vector<16x72xf32>
    %38 = vector.extract_strided_slice %2 {offsets = [5, 0], sizes = [1, 72], strides = [1, 1]} : vector<49x72xf32> to vector<1x72xf32>
    %39 = vector.broadcast %38 : vector<1x72xf32> to vector<16x72xf32>
    %40 = arith.mulf %37, %39 : vector<16x72xf32>
    %41 = arith.addf %35, %40 : vector<16x72xf32>
    %c0_20 = arith.constant 0 : index
    %c0_21 = arith.constant 0 : index
    %c24 = arith.constant 24 : index
    %42 = vector.load %arg1[%c0_20, %c0_21, %c24] : memref<1x22x96xf32, #tpu.memory_space<vmem>>, vector<1x16x72xf32>
    %43 = vector.shape_cast %42 : vector<1x16x72xf32> to vector<16x72xf32>
    %44 = vector.extract_strided_slice %2 {offsets = [6, 0], sizes = [1, 72], strides = [1, 1]} : vector<49x72xf32> to vector<1x72xf32>
    %45 = vector.broadcast %44 : vector<1x72xf32> to vector<16x72xf32>
    %46 = arith.mulf %43, %45 : vector<16x72xf32>
    %47 = arith.addf %41, %46 : vector<16x72xf32>
    %c0_22 = arith.constant 0 : index
    %c1 = arith.constant 1 : index
    %c0_23 = arith.constant 0 : index
    %48 = vector.load %arg1[%c0_22, %c1, %c0_23] : memref<1x22x96xf32, #tpu.memory_space<vmem>>, vector<1x16x72xf32>
    %49 = vector.shape_cast %48 : vector<1x16x72xf32> to vector<16x72xf32>
    %50 = vector.extract_strided_slice %2 {offsets = [7, 0], sizes = [1, 72], strides = [1, 1]} : vector<49x72xf32> to vector<1x72xf32>
    %51 = vector.broadcast %50 : vector<1x72xf32> to vector<16x72xf32>
    %52 = arith.mulf %49, %51 : vector<16x72xf32>
    %53 = arith.addf %47, %52 : vector<16x72xf32>
    %c0_24 = arith.constant 0 : index
    %c1_25 = arith.constant 1 : index
    %c4_26 = arith.constant 4 : index
    %54 = vector.load %arg1[%c0_24, %c1_25, %c4_26] : memref<1x22x96xf32, #tpu.memory_space<vmem>>, vector<1x16x72xf32>
    %55 = vector.shape_cast %54 : vector<1x16x72xf32> to vector<16x72xf32>
    %56 = vector.extract_strided_slice %2 {offsets = [8, 0], sizes = [1, 72], strides = [1, 1]} : vector<49x72xf32> to vector<1x72xf32>
    %57 = vector.broadcast %56 : vector<1x72xf32> to vector<16x72xf32>
    %58 = arith.mulf %55, %57 : vector<16x72xf32>
    %59 = arith.addf %53, %58 : vector<16x72xf32>
    %60 = vector.extract_strided_slice %1 {offsets = [0, 0], sizes = [1, 72], strides = [1, 1]} : vector<25x72xf32> to vector<1x72xf32>
    %61 = vector.broadcast %60 : vector<1x72xf32> to vector<16x72xf32>
    %62 = arith.mulf %55, %61 : vector<16x72xf32>
    %63 = arith.addf %4, %62 : vector<16x72xf32>
    %c0_27 = arith.constant 0 : index
    %c1_28 = arith.constant 1 : index
    %c8_29 = arith.constant 8 : index
    %64 = vector.load %arg1[%c0_27, %c1_28, %c8_29] : memref<1x22x96xf32, #tpu.memory_space<vmem>>, vector<1x16x72xf32>
    %65 = vector.shape_cast %64 : vector<1x16x72xf32> to vector<16x72xf32>
    %66 = vector.extract_strided_slice %2 {offsets = [9, 0], sizes = [1, 72], strides = [1, 1]} : vector<49x72xf32> to vector<1x72xf32>
    %67 = vector.broadcast %66 : vector<1x72xf32> to vector<16x72xf32>
    %68 = arith.mulf %65, %67 : vector<16x72xf32>
    %69 = arith.addf %59, %68 : vector<16x72xf32>
    %70 = vector.extract_strided_slice %1 {offsets = [1, 0], sizes = [1, 72], strides = [1, 1]} : vector<25x72xf32> to vector<1x72xf32>
    %71 = vector.broadcast %70 : vector<1x72xf32> to vector<16x72xf32>
    %72 = arith.mulf %65, %71 : vector<16x72xf32>
    %73 = arith.addf %63, %72 : vector<16x72xf32>
    %c0_30 = arith.constant 0 : index
    %c1_31 = arith.constant 1 : index
    %c12_32 = arith.constant 12 : index
    %74 = vector.load %arg1[%c0_30, %c1_31, %c12_32] : memref<1x22x96xf32, #tpu.memory_space<vmem>>, vector<1x16x72xf32>
    %75 = vector.shape_cast %74 : vector<1x16x72xf32> to vector<16x72xf32>
    %76 = vector.extract_strided_slice %2 {offsets = [10, 0], sizes = [1, 72], strides = [1, 1]} : vector<49x72xf32> to vector<1x72xf32>
    %77 = vector.broadcast %76 : vector<1x72xf32> to vector<16x72xf32>
    %78 = arith.mulf %75, %77 : vector<16x72xf32>
    %79 = arith.addf %69, %78 : vector<16x72xf32>
    %80 = vector.extract_strided_slice %1 {offsets = [2, 0], sizes = [1, 72], strides = [1, 1]} : vector<25x72xf32> to vector<1x72xf32>
    %81 = vector.broadcast %80 : vector<1x72xf32> to vector<16x72xf32>
    %82 = arith.mulf %75, %81 : vector<16x72xf32>
    %83 = arith.addf %73, %82 : vector<16x72xf32>
    %c0_33 = arith.constant 0 : index
    %c1_34 = arith.constant 1 : index
    %c16_35 = arith.constant 16 : index
    %84 = vector.load %arg1[%c0_33, %c1_34, %c16_35] : memref<1x22x96xf32, #tpu.memory_space<vmem>>, vector<1x16x72xf32>
    %85 = vector.shape_cast %84 : vector<1x16x72xf32> to vector<16x72xf32>
    %86 = vector.extract_strided_slice %2 {offsets = [11, 0], sizes = [1, 72], strides = [1, 1]} : vector<49x72xf32> to vector<1x72xf32>
    %87 = vector.broadcast %86 : vector<1x72xf32> to vector<16x72xf32>
    %88 = arith.mulf %85, %87 : vector<16x72xf32>
    %89 = arith.addf %79, %88 : vector<16x72xf32>
    %90 = vector.extract_strided_slice %1 {offsets = [3, 0], sizes = [1, 72], strides = [1, 1]} : vector<25x72xf32> to vector<1x72xf32>
    %91 = vector.broadcast %90 : vector<1x72xf32> to vector<16x72xf32>
    %92 = arith.mulf %85, %91 : vector<16x72xf32>
    %93 = arith.addf %83, %92 : vector<16x72xf32>
    %c0_36 = arith.constant 0 : index
    %c1_37 = arith.constant 1 : index
    %c20_38 = arith.constant 20 : index
    %94 = vector.load %arg1[%c0_36, %c1_37, %c20_38] : memref<1x22x96xf32, #tpu.memory_space<vmem>>, vector<1x16x72xf32>
    %95 = vector.shape_cast %94 : vector<1x16x72xf32> to vector<16x72xf32>
    %96 = vector.extract_strided_slice %2 {offsets = [12, 0], sizes = [1, 72], strides = [1, 1]} : vector<49x72xf32> to vector<1x72xf32>
    %97 = vector.broadcast %96 : vector<1x72xf32> to vector<16x72xf32>
    %98 = arith.mulf %95, %97 : vector<16x72xf32>
    %99 = arith.addf %89, %98 : vector<16x72xf32>
    %100 = vector.extract_strided_slice %1 {offsets = [4, 0], sizes = [1, 72], strides = [1, 1]} : vector<25x72xf32> to vector<1x72xf32>
    %101 = vector.broadcast %100 : vector<1x72xf32> to vector<16x72xf32>
    %102 = arith.mulf %95, %101 : vector<16x72xf32>
    %103 = arith.addf %93, %102 : vector<16x72xf32>
    %c0_39 = arith.constant 0 : index
    %c1_40 = arith.constant 1 : index
    %c24_41 = arith.constant 24 : index
    %104 = vector.load %arg1[%c0_39, %c1_40, %c24_41] : memref<1x22x96xf32, #tpu.memory_space<vmem>>, vector<1x16x72xf32>
    %105 = vector.shape_cast %104 : vector<1x16x72xf32> to vector<16x72xf32>
    %106 = vector.extract_strided_slice %2 {offsets = [13, 0], sizes = [1, 72], strides = [1, 1]} : vector<49x72xf32> to vector<1x72xf32>
    %107 = vector.broadcast %106 : vector<1x72xf32> to vector<16x72xf32>
    %108 = arith.mulf %105, %107 : vector<16x72xf32>
    %109 = arith.addf %99, %108 : vector<16x72xf32>
    %c0_42 = arith.constant 0 : index
    %c2 = arith.constant 2 : index
    %c0_43 = arith.constant 0 : index
    %110 = vector.load %arg1[%c0_42, %c2, %c0_43] : memref<1x22x96xf32, #tpu.memory_space<vmem>>, vector<1x16x72xf32>
    %111 = vector.shape_cast %110 : vector<1x16x72xf32> to vector<16x72xf32>
    %112 = vector.extract_strided_slice %2 {offsets = [14, 0], sizes = [1, 72], strides = [1, 1]} : vector<49x72xf32> to vector<1x72xf32>
    %113 = vector.broadcast %112 : vector<1x72xf32> to vector<16x72xf32>
    %114 = arith.mulf %111, %113 : vector<16x72xf32>
    %115 = arith.addf %109, %114 : vector<16x72xf32>
    %c0_44 = arith.constant 0 : index
    %c2_45 = arith.constant 2 : index
    %c4_46 = arith.constant 4 : index
    %116 = vector.load %arg1[%c0_44, %c2_45, %c4_46] : memref<1x22x96xf32, #tpu.memory_space<vmem>>, vector<1x16x72xf32>
    %117 = vector.shape_cast %116 : vector<1x16x72xf32> to vector<16x72xf32>
    %118 = vector.extract_strided_slice %2 {offsets = [15, 0], sizes = [1, 72], strides = [1, 1]} : vector<49x72xf32> to vector<1x72xf32>
    %119 = vector.broadcast %118 : vector<1x72xf32> to vector<16x72xf32>
    %120 = arith.mulf %117, %119 : vector<16x72xf32>
    %121 = arith.addf %115, %120 : vector<16x72xf32>
    %122 = vector.extract_strided_slice %1 {offsets = [5, 0], sizes = [1, 72], strides = [1, 1]} : vector<25x72xf32> to vector<1x72xf32>
    %123 = vector.broadcast %122 : vector<1x72xf32> to vector<16x72xf32>
    %124 = arith.mulf %117, %123 : vector<16x72xf32>
    %125 = arith.addf %103, %124 : vector<16x72xf32>
    %c0_47 = arith.constant 0 : index
    %c2_48 = arith.constant 2 : index
    %c8_49 = arith.constant 8 : index
    %126 = vector.load %arg1[%c0_47, %c2_48, %c8_49] : memref<1x22x96xf32, #tpu.memory_space<vmem>>, vector<1x16x72xf32>
    %127 = vector.shape_cast %126 : vector<1x16x72xf32> to vector<16x72xf32>
    %128 = vector.extract_strided_slice %2 {offsets = [16, 0], sizes = [1, 72], strides = [1, 1]} : vector<49x72xf32> to vector<1x72xf32>
    %129 = vector.broadcast %128 : vector<1x72xf32> to vector<16x72xf32>
    %130 = arith.mulf %127, %129 : vector<16x72xf32>
    %131 = arith.addf %121, %130 : vector<16x72xf32>
    %132 = vector.extract_strided_slice %1 {offsets = [6, 0], sizes = [1, 72], strides = [1, 1]} : vector<25x72xf32> to vector<1x72xf32>
    %133 = vector.broadcast %132 : vector<1x72xf32> to vector<16x72xf32>
    %134 = arith.mulf %127, %133 : vector<16x72xf32>
    %135 = arith.addf %125, %134 : vector<16x72xf32>
    %136 = vector.extract_strided_slice %0 {offsets = [0, 0], sizes = [1, 72], strides = [1, 1]} : vector<9x72xf32> to vector<1x72xf32>
    %137 = vector.broadcast %136 : vector<1x72xf32> to vector<16x72xf32>
    %138 = arith.mulf %127, %137 : vector<16x72xf32>
    %139 = arith.addf %3, %138 : vector<16x72xf32>
    %c0_50 = arith.constant 0 : index
    %c2_51 = arith.constant 2 : index
    %c12_52 = arith.constant 12 : index
    %140 = vector.load %arg1[%c0_50, %c2_51, %c12_52] : memref<1x22x96xf32, #tpu.memory_space<vmem>>, vector<1x16x72xf32>
    %141 = vector.shape_cast %140 : vector<1x16x72xf32> to vector<16x72xf32>
    %142 = vector.extract_strided_slice %2 {offsets = [17, 0], sizes = [1, 72], strides = [1, 1]} : vector<49x72xf32> to vector<1x72xf32>
    %143 = vector.broadcast %142 : vector<1x72xf32> to vector<16x72xf32>
    %144 = arith.mulf %141, %143 : vector<16x72xf32>
    %145 = arith.addf %131, %144 : vector<16x72xf32>
    %146 = vector.extract_strided_slice %1 {offsets = [7, 0], sizes = [1, 72], strides = [1, 1]} : vector<25x72xf32> to vector<1x72xf32>
    %147 = vector.broadcast %146 : vector<1x72xf32> to vector<16x72xf32>
    %148 = arith.mulf %141, %147 : vector<16x72xf32>
    %149 = arith.addf %135, %148 : vector<16x72xf32>
    %150 = vector.extract_strided_slice %0 {offsets = [1, 0], sizes = [1, 72], strides = [1, 1]} : vector<9x72xf32> to vector<1x72xf32>
    %151 = vector.broadcast %150 : vector<1x72xf32> to vector<16x72xf32>
    %152 = arith.mulf %141, %151 : vector<16x72xf32>
    %153 = arith.addf %139, %152 : vector<16x72xf32>
    %c0_53 = arith.constant 0 : index
    %c2_54 = arith.constant 2 : index
    %c16_55 = arith.constant 16 : index
    %154 = vector.load %arg1[%c0_53, %c2_54, %c16_55] : memref<1x22x96xf32, #tpu.memory_space<vmem>>, vector<1x16x72xf32>
    %155 = vector.shape_cast %154 : vector<1x16x72xf32> to vector<16x72xf32>
    %156 = vector.extract_strided_slice %2 {offsets = [18, 0], sizes = [1, 72], strides = [1, 1]} : vector<49x72xf32> to vector<1x72xf32>
    %157 = vector.broadcast %156 : vector<1x72xf32> to vector<16x72xf32>
    %158 = arith.mulf %155, %157 : vector<16x72xf32>
    %159 = arith.addf %145, %158 : vector<16x72xf32>
    %160 = vector.extract_strided_slice %1 {offsets = [8, 0], sizes = [1, 72], strides = [1, 1]} : vector<25x72xf32> to vector<1x72xf32>
    %161 = vector.broadcast %160 : vector<1x72xf32> to vector<16x72xf32>
    %162 = arith.mulf %155, %161 : vector<16x72xf32>
    %163 = arith.addf %149, %162 : vector<16x72xf32>
    %164 = vector.extract_strided_slice %0 {offsets = [2, 0], sizes = [1, 72], strides = [1, 1]} : vector<9x72xf32> to vector<1x72xf32>
    %165 = vector.broadcast %164 : vector<1x72xf32> to vector<16x72xf32>
    %166 = arith.mulf %155, %165 : vector<16x72xf32>
    %167 = arith.addf %153, %166 : vector<16x72xf32>
    %c0_56 = arith.constant 0 : index
    %c2_57 = arith.constant 2 : index
    %c20_58 = arith.constant 20 : index
    %168 = vector.load %arg1[%c0_56, %c2_57, %c20_58] : memref<1x22x96xf32, #tpu.memory_space<vmem>>, vector<1x16x72xf32>
    %169 = vector.shape_cast %168 : vector<1x16x72xf32> to vector<16x72xf32>
    %170 = vector.extract_strided_slice %2 {offsets = [19, 0], sizes = [1, 72], strides = [1, 1]} : vector<49x72xf32> to vector<1x72xf32>
    %171 = vector.broadcast %170 : vector<1x72xf32> to vector<16x72xf32>
    %172 = arith.mulf %169, %171 : vector<16x72xf32>
    %173 = arith.addf %159, %172 : vector<16x72xf32>
    %174 = vector.extract_strided_slice %1 {offsets = [9, 0], sizes = [1, 72], strides = [1, 1]} : vector<25x72xf32> to vector<1x72xf32>
    %175 = vector.broadcast %174 : vector<1x72xf32> to vector<16x72xf32>
    %176 = arith.mulf %169, %175 : vector<16x72xf32>
    %177 = arith.addf %163, %176 : vector<16x72xf32>
    %c0_59 = arith.constant 0 : index
    %c2_60 = arith.constant 2 : index
    %c24_61 = arith.constant 24 : index
    %178 = vector.load %arg1[%c0_59, %c2_60, %c24_61] : memref<1x22x96xf32, #tpu.memory_space<vmem>>, vector<1x16x72xf32>
    %179 = vector.shape_cast %178 : vector<1x16x72xf32> to vector<16x72xf32>
    %180 = vector.extract_strided_slice %2 {offsets = [20, 0], sizes = [1, 72], strides = [1, 1]} : vector<49x72xf32> to vector<1x72xf32>
    %181 = vector.broadcast %180 : vector<1x72xf32> to vector<16x72xf32>
    %182 = arith.mulf %179, %181 : vector<16x72xf32>
    %183 = arith.addf %173, %182 : vector<16x72xf32>
    %c0_62 = arith.constant 0 : index
    %c3 = arith.constant 3 : index
    %c0_63 = arith.constant 0 : index
    %184 = vector.load %arg1[%c0_62, %c3, %c0_63] : memref<1x22x96xf32, #tpu.memory_space<vmem>>, vector<1x16x72xf32>
    %185 = vector.shape_cast %184 : vector<1x16x72xf32> to vector<16x72xf32>
    %186 = vector.extract_strided_slice %2 {offsets = [21, 0], sizes = [1, 72], strides = [1, 1]} : vector<49x72xf32> to vector<1x72xf32>
    %187 = vector.broadcast %186 : vector<1x72xf32> to vector<16x72xf32>
    %188 = arith.mulf %185, %187 : vector<16x72xf32>
    %189 = arith.addf %183, %188 : vector<16x72xf32>
    %c0_64 = arith.constant 0 : index
    %c3_65 = arith.constant 3 : index
    %c4_66 = arith.constant 4 : index
    %190 = vector.load %arg1[%c0_64, %c3_65, %c4_66] : memref<1x22x96xf32, #tpu.memory_space<vmem>>, vector<1x16x72xf32>
    %191 = vector.shape_cast %190 : vector<1x16x72xf32> to vector<16x72xf32>
    %192 = vector.extract_strided_slice %2 {offsets = [22, 0], sizes = [1, 72], strides = [1, 1]} : vector<49x72xf32> to vector<1x72xf32>
    %193 = vector.broadcast %192 : vector<1x72xf32> to vector<16x72xf32>
    %194 = arith.mulf %191, %193 : vector<16x72xf32>
    %195 = arith.addf %189, %194 : vector<16x72xf32>
    %196 = vector.extract_strided_slice %1 {offsets = [10, 0], sizes = [1, 72], strides = [1, 1]} : vector<25x72xf32> to vector<1x72xf32>
    %197 = vector.broadcast %196 : vector<1x72xf32> to vector<16x72xf32>
    %198 = arith.mulf %191, %197 : vector<16x72xf32>
    %199 = arith.addf %177, %198 : vector<16x72xf32>
    %c0_67 = arith.constant 0 : index
    %c3_68 = arith.constant 3 : index
    %c8_69 = arith.constant 8 : index
    %200 = vector.load %arg1[%c0_67, %c3_68, %c8_69] : memref<1x22x96xf32, #tpu.memory_space<vmem>>, vector<1x16x72xf32>
    %201 = vector.shape_cast %200 : vector<1x16x72xf32> to vector<16x72xf32>
    %202 = vector.extract_strided_slice %2 {offsets = [23, 0], sizes = [1, 72], strides = [1, 1]} : vector<49x72xf32> to vector<1x72xf32>
    %203 = vector.broadcast %202 : vector<1x72xf32> to vector<16x72xf32>
    %204 = arith.mulf %201, %203 : vector<16x72xf32>
    %205 = arith.addf %195, %204 : vector<16x72xf32>
    %206 = vector.extract_strided_slice %1 {offsets = [11, 0], sizes = [1, 72], strides = [1, 1]} : vector<25x72xf32> to vector<1x72xf32>
    %207 = vector.broadcast %206 : vector<1x72xf32> to vector<16x72xf32>
    %208 = arith.mulf %201, %207 : vector<16x72xf32>
    %209 = arith.addf %199, %208 : vector<16x72xf32>
    %210 = vector.extract_strided_slice %0 {offsets = [3, 0], sizes = [1, 72], strides = [1, 1]} : vector<9x72xf32> to vector<1x72xf32>
    %211 = vector.broadcast %210 : vector<1x72xf32> to vector<16x72xf32>
    %212 = arith.mulf %201, %211 : vector<16x72xf32>
    %213 = arith.addf %167, %212 : vector<16x72xf32>
    %c0_70 = arith.constant 0 : index
    %c3_71 = arith.constant 3 : index
    %c12_72 = arith.constant 12 : index
    %214 = vector.load %arg1[%c0_70, %c3_71, %c12_72] : memref<1x22x96xf32, #tpu.memory_space<vmem>>, vector<1x16x72xf32>
    %215 = vector.shape_cast %214 : vector<1x16x72xf32> to vector<16x72xf32>
    %216 = vector.extract_strided_slice %2 {offsets = [24, 0], sizes = [1, 72], strides = [1, 1]} : vector<49x72xf32> to vector<1x72xf32>
    %217 = vector.broadcast %216 : vector<1x72xf32> to vector<16x72xf32>
    %218 = arith.mulf %215, %217 : vector<16x72xf32>
    %219 = arith.addf %205, %218 : vector<16x72xf32>
    %220 = vector.extract_strided_slice %1 {offsets = [12, 0], sizes = [1, 72], strides = [1, 1]} : vector<25x72xf32> to vector<1x72xf32>
    %221 = vector.broadcast %220 : vector<1x72xf32> to vector<16x72xf32>
    %222 = arith.mulf %215, %221 : vector<16x72xf32>
    %223 = arith.addf %209, %222 : vector<16x72xf32>
    %224 = vector.extract_strided_slice %0 {offsets = [4, 0], sizes = [1, 72], strides = [1, 1]} : vector<9x72xf32> to vector<1x72xf32>
    %225 = vector.broadcast %224 : vector<1x72xf32> to vector<16x72xf32>
    %226 = arith.mulf %215, %225 : vector<16x72xf32>
    %227 = arith.addf %213, %226 : vector<16x72xf32>
    %c0_73 = arith.constant 0 : index
    %c3_74 = arith.constant 3 : index
    %c16_75 = arith.constant 16 : index
    %228 = vector.load %arg1[%c0_73, %c3_74, %c16_75] : memref<1x22x96xf32, #tpu.memory_space<vmem>>, vector<1x16x72xf32>
    %229 = vector.shape_cast %228 : vector<1x16x72xf32> to vector<16x72xf32>
    %230 = vector.extract_strided_slice %2 {offsets = [25, 0], sizes = [1, 72], strides = [1, 1]} : vector<49x72xf32> to vector<1x72xf32>
    %231 = vector.broadcast %230 : vector<1x72xf32> to vector<16x72xf32>
    %232 = arith.mulf %229, %231 : vector<16x72xf32>
    %233 = arith.addf %219, %232 : vector<16x72xf32>
    %234 = vector.extract_strided_slice %1 {offsets = [13, 0], sizes = [1, 72], strides = [1, 1]} : vector<25x72xf32> to vector<1x72xf32>
    %235 = vector.broadcast %234 : vector<1x72xf32> to vector<16x72xf32>
    %236 = arith.mulf %229, %235 : vector<16x72xf32>
    %237 = arith.addf %223, %236 : vector<16x72xf32>
    %238 = vector.extract_strided_slice %0 {offsets = [5, 0], sizes = [1, 72], strides = [1, 1]} : vector<9x72xf32> to vector<1x72xf32>
    %239 = vector.broadcast %238 : vector<1x72xf32> to vector<16x72xf32>
    %240 = arith.mulf %229, %239 : vector<16x72xf32>
    %241 = arith.addf %227, %240 : vector<16x72xf32>
    %c0_76 = arith.constant 0 : index
    %c3_77 = arith.constant 3 : index
    %c20_78 = arith.constant 20 : index
    %242 = vector.load %arg1[%c0_76, %c3_77, %c20_78] : memref<1x22x96xf32, #tpu.memory_space<vmem>>, vector<1x16x72xf32>
    %243 = vector.shape_cast %242 : vector<1x16x72xf32> to vector<16x72xf32>
    %244 = vector.extract_strided_slice %2 {offsets = [26, 0], sizes = [1, 72], strides = [1, 1]} : vector<49x72xf32> to vector<1x72xf32>
    %245 = vector.broadcast %244 : vector<1x72xf32> to vector<16x72xf32>
    %246 = arith.mulf %243, %245 : vector<16x72xf32>
    %247 = arith.addf %233, %246 : vector<16x72xf32>
    %248 = vector.extract_strided_slice %1 {offsets = [14, 0], sizes = [1, 72], strides = [1, 1]} : vector<25x72xf32> to vector<1x72xf32>
    %249 = vector.broadcast %248 : vector<1x72xf32> to vector<16x72xf32>
    %250 = arith.mulf %243, %249 : vector<16x72xf32>
    %251 = arith.addf %237, %250 : vector<16x72xf32>
    %c0_79 = arith.constant 0 : index
    %c3_80 = arith.constant 3 : index
    %c24_81 = arith.constant 24 : index
    %252 = vector.load %arg1[%c0_79, %c3_80, %c24_81] : memref<1x22x96xf32, #tpu.memory_space<vmem>>, vector<1x16x72xf32>
    %253 = vector.shape_cast %252 : vector<1x16x72xf32> to vector<16x72xf32>
    %254 = vector.extract_strided_slice %2 {offsets = [27, 0], sizes = [1, 72], strides = [1, 1]} : vector<49x72xf32> to vector<1x72xf32>
    %255 = vector.broadcast %254 : vector<1x72xf32> to vector<16x72xf32>
    %256 = arith.mulf %253, %255 : vector<16x72xf32>
    %257 = arith.addf %247, %256 : vector<16x72xf32>
    %c0_82 = arith.constant 0 : index
    %c4_83 = arith.constant 4 : index
    %c0_84 = arith.constant 0 : index
    %258 = vector.load %arg1[%c0_82, %c4_83, %c0_84] : memref<1x22x96xf32, #tpu.memory_space<vmem>>, vector<1x16x72xf32>
    %259 = vector.shape_cast %258 : vector<1x16x72xf32> to vector<16x72xf32>
    %260 = vector.extract_strided_slice %2 {offsets = [28, 0], sizes = [1, 72], strides = [1, 1]} : vector<49x72xf32> to vector<1x72xf32>
    %261 = vector.broadcast %260 : vector<1x72xf32> to vector<16x72xf32>
    %262 = arith.mulf %259, %261 : vector<16x72xf32>
    %263 = arith.addf %257, %262 : vector<16x72xf32>
    %c0_85 = arith.constant 0 : index
    %c4_86 = arith.constant 4 : index
    %c4_87 = arith.constant 4 : index
    %264 = vector.load %arg1[%c0_85, %c4_86, %c4_87] : memref<1x22x96xf32, #tpu.memory_space<vmem>>, vector<1x16x72xf32>
    %265 = vector.shape_cast %264 : vector<1x16x72xf32> to vector<16x72xf32>
    %266 = vector.extract_strided_slice %2 {offsets = [29, 0], sizes = [1, 72], strides = [1, 1]} : vector<49x72xf32> to vector<1x72xf32>
    %267 = vector.broadcast %266 : vector<1x72xf32> to vector<16x72xf32>
    %268 = arith.mulf %265, %267 : vector<16x72xf32>
    %269 = arith.addf %263, %268 : vector<16x72xf32>
    %270 = vector.extract_strided_slice %1 {offsets = [15, 0], sizes = [1, 72], strides = [1, 1]} : vector<25x72xf32> to vector<1x72xf32>
    %271 = vector.broadcast %270 : vector<1x72xf32> to vector<16x72xf32>
    %272 = arith.mulf %265, %271 : vector<16x72xf32>
    %273 = arith.addf %251, %272 : vector<16x72xf32>
    %c0_88 = arith.constant 0 : index
    %c4_89 = arith.constant 4 : index
    %c8_90 = arith.constant 8 : index
    %274 = vector.load %arg1[%c0_88, %c4_89, %c8_90] : memref<1x22x96xf32, #tpu.memory_space<vmem>>, vector<1x16x72xf32>
    %275 = vector.shape_cast %274 : vector<1x16x72xf32> to vector<16x72xf32>
    %276 = vector.extract_strided_slice %2 {offsets = [30, 0], sizes = [1, 72], strides = [1, 1]} : vector<49x72xf32> to vector<1x72xf32>
    %277 = vector.broadcast %276 : vector<1x72xf32> to vector<16x72xf32>
    %278 = arith.mulf %275, %277 : vector<16x72xf32>
    %279 = arith.addf %269, %278 : vector<16x72xf32>
    %280 = vector.extract_strided_slice %1 {offsets = [16, 0], sizes = [1, 72], strides = [1, 1]} : vector<25x72xf32> to vector<1x72xf32>
    %281 = vector.broadcast %280 : vector<1x72xf32> to vector<16x72xf32>
    %282 = arith.mulf %275, %281 : vector<16x72xf32>
    %283 = arith.addf %273, %282 : vector<16x72xf32>
    %284 = vector.extract_strided_slice %0 {offsets = [6, 0], sizes = [1, 72], strides = [1, 1]} : vector<9x72xf32> to vector<1x72xf32>
    %285 = vector.broadcast %284 : vector<1x72xf32> to vector<16x72xf32>
    %286 = arith.mulf %275, %285 : vector<16x72xf32>
    %287 = arith.addf %241, %286 : vector<16x72xf32>
    %c0_91 = arith.constant 0 : index
    %c4_92 = arith.constant 4 : index
    %c12_93 = arith.constant 12 : index
    %288 = vector.load %arg1[%c0_91, %c4_92, %c12_93] : memref<1x22x96xf32, #tpu.memory_space<vmem>>, vector<1x16x72xf32>
    %289 = vector.shape_cast %288 : vector<1x16x72xf32> to vector<16x72xf32>
    %290 = vector.extract_strided_slice %2 {offsets = [31, 0], sizes = [1, 72], strides = [1, 1]} : vector<49x72xf32> to vector<1x72xf32>
    %291 = vector.broadcast %290 : vector<1x72xf32> to vector<16x72xf32>
    %292 = arith.mulf %289, %291 : vector<16x72xf32>
    %293 = arith.addf %279, %292 : vector<16x72xf32>
    %294 = vector.extract_strided_slice %1 {offsets = [17, 0], sizes = [1, 72], strides = [1, 1]} : vector<25x72xf32> to vector<1x72xf32>
    %295 = vector.broadcast %294 : vector<1x72xf32> to vector<16x72xf32>
    %296 = arith.mulf %289, %295 : vector<16x72xf32>
    %297 = arith.addf %283, %296 : vector<16x72xf32>
    %298 = vector.extract_strided_slice %0 {offsets = [7, 0], sizes = [1, 72], strides = [1, 1]} : vector<9x72xf32> to vector<1x72xf32>
    %299 = vector.broadcast %298 : vector<1x72xf32> to vector<16x72xf32>
    %300 = arith.mulf %289, %299 : vector<16x72xf32>
    %301 = arith.addf %287, %300 : vector<16x72xf32>
    %c0_94 = arith.constant 0 : index
    %c4_95 = arith.constant 4 : index
    %c16_96 = arith.constant 16 : index
    %302 = vector.load %arg1[%c0_94, %c4_95, %c16_96] : memref<1x22x96xf32, #tpu.memory_space<vmem>>, vector<1x16x72xf32>
    %303 = vector.shape_cast %302 : vector<1x16x72xf32> to vector<16x72xf32>
    %304 = vector.extract_strided_slice %2 {offsets = [32, 0], sizes = [1, 72], strides = [1, 1]} : vector<49x72xf32> to vector<1x72xf32>
    %305 = vector.broadcast %304 : vector<1x72xf32> to vector<16x72xf32>
    %306 = arith.mulf %303, %305 : vector<16x72xf32>
    %307 = arith.addf %293, %306 : vector<16x72xf32>
    %308 = vector.extract_strided_slice %1 {offsets = [18, 0], sizes = [1, 72], strides = [1, 1]} : vector<25x72xf32> to vector<1x72xf32>
    %309 = vector.broadcast %308 : vector<1x72xf32> to vector<16x72xf32>
    %310 = arith.mulf %303, %309 : vector<16x72xf32>
    %311 = arith.addf %297, %310 : vector<16x72xf32>
    %312 = vector.extract_strided_slice %0 {offsets = [8, 0], sizes = [1, 72], strides = [1, 1]} : vector<9x72xf32> to vector<1x72xf32>
    %313 = vector.broadcast %312 : vector<1x72xf32> to vector<16x72xf32>
    %314 = arith.mulf %303, %313 : vector<16x72xf32>
    %315 = arith.addf %301, %314 : vector<16x72xf32>
    %c0_97 = arith.constant 0 : index
    %c4_98 = arith.constant 4 : index
    %c20_99 = arith.constant 20 : index
    %316 = vector.load %arg1[%c0_97, %c4_98, %c20_99] : memref<1x22x96xf32, #tpu.memory_space<vmem>>, vector<1x16x72xf32>
    %317 = vector.shape_cast %316 : vector<1x16x72xf32> to vector<16x72xf32>
    %318 = vector.extract_strided_slice %2 {offsets = [33, 0], sizes = [1, 72], strides = [1, 1]} : vector<49x72xf32> to vector<1x72xf32>
    %319 = vector.broadcast %318 : vector<1x72xf32> to vector<16x72xf32>
    %320 = arith.mulf %317, %319 : vector<16x72xf32>
    %321 = arith.addf %307, %320 : vector<16x72xf32>
    %322 = vector.extract_strided_slice %1 {offsets = [19, 0], sizes = [1, 72], strides = [1, 1]} : vector<25x72xf32> to vector<1x72xf32>
    %323 = vector.broadcast %322 : vector<1x72xf32> to vector<16x72xf32>
    %324 = arith.mulf %317, %323 : vector<16x72xf32>
    %325 = arith.addf %311, %324 : vector<16x72xf32>
    %c0_100 = arith.constant 0 : index
    %c4_101 = arith.constant 4 : index
    %c24_102 = arith.constant 24 : index
    %326 = vector.load %arg1[%c0_100, %c4_101, %c24_102] : memref<1x22x96xf32, #tpu.memory_space<vmem>>, vector<1x16x72xf32>
    %327 = vector.shape_cast %326 : vector<1x16x72xf32> to vector<16x72xf32>
    %328 = vector.extract_strided_slice %2 {offsets = [34, 0], sizes = [1, 72], strides = [1, 1]} : vector<49x72xf32> to vector<1x72xf32>
    %329 = vector.broadcast %328 : vector<1x72xf32> to vector<16x72xf32>
    %330 = arith.mulf %327, %329 : vector<16x72xf32>
    %331 = arith.addf %321, %330 : vector<16x72xf32>
    %c0_103 = arith.constant 0 : index
    %c5 = arith.constant 5 : index
    %c0_104 = arith.constant 0 : index
    %332 = vector.load %arg1[%c0_103, %c5, %c0_104] : memref<1x22x96xf32, #tpu.memory_space<vmem>>, vector<1x16x72xf32>
    %333 = vector.shape_cast %332 : vector<1x16x72xf32> to vector<16x72xf32>
    %334 = vector.extract_strided_slice %2 {offsets = [35, 0], sizes = [1, 72], strides = [1, 1]} : vector<49x72xf32> to vector<1x72xf32>
    %335 = vector.broadcast %334 : vector<1x72xf32> to vector<16x72xf32>
    %336 = arith.mulf %333, %335 : vector<16x72xf32>
    %337 = arith.addf %331, %336 : vector<16x72xf32>
    %c0_105 = arith.constant 0 : index
    %c5_106 = arith.constant 5 : index
    %c4_107 = arith.constant 4 : index
    %338 = vector.load %arg1[%c0_105, %c5_106, %c4_107] : memref<1x22x96xf32, #tpu.memory_space<vmem>>, vector<1x16x72xf32>
    %339 = vector.shape_cast %338 : vector<1x16x72xf32> to vector<16x72xf32>
    %340 = vector.extract_strided_slice %2 {offsets = [36, 0], sizes = [1, 72], strides = [1, 1]} : vector<49x72xf32> to vector<1x72xf32>
    %341 = vector.broadcast %340 : vector<1x72xf32> to vector<16x72xf32>
    %342 = arith.mulf %339, %341 : vector<16x72xf32>
    %343 = arith.addf %337, %342 : vector<16x72xf32>
    %344 = vector.extract_strided_slice %1 {offsets = [20, 0], sizes = [1, 72], strides = [1, 1]} : vector<25x72xf32> to vector<1x72xf32>
    %345 = vector.broadcast %344 : vector<1x72xf32> to vector<16x72xf32>
    %346 = arith.mulf %339, %345 : vector<16x72xf32>
    %347 = arith.addf %325, %346 : vector<16x72xf32>
    %c0_108 = arith.constant 0 : index
    %c5_109 = arith.constant 5 : index
    %c8_110 = arith.constant 8 : index
    %348 = vector.load %arg1[%c0_108, %c5_109, %c8_110] : memref<1x22x96xf32, #tpu.memory_space<vmem>>, vector<1x16x72xf32>
    %349 = vector.shape_cast %348 : vector<1x16x72xf32> to vector<16x72xf32>
    %350 = vector.extract_strided_slice %2 {offsets = [37, 0], sizes = [1, 72], strides = [1, 1]} : vector<49x72xf32> to vector<1x72xf32>
    %351 = vector.broadcast %350 : vector<1x72xf32> to vector<16x72xf32>
    %352 = arith.mulf %349, %351 : vector<16x72xf32>
    %353 = arith.addf %343, %352 : vector<16x72xf32>
    %354 = vector.extract_strided_slice %1 {offsets = [21, 0], sizes = [1, 72], strides = [1, 1]} : vector<25x72xf32> to vector<1x72xf32>
    %355 = vector.broadcast %354 : vector<1x72xf32> to vector<16x72xf32>
    %356 = arith.mulf %349, %355 : vector<16x72xf32>
    %357 = arith.addf %347, %356 : vector<16x72xf32>
    %c0_111 = arith.constant 0 : index
    %c5_112 = arith.constant 5 : index
    %c12_113 = arith.constant 12 : index
    %358 = vector.load %arg1[%c0_111, %c5_112, %c12_113] : memref<1x22x96xf32, #tpu.memory_space<vmem>>, vector<1x16x72xf32>
    %359 = vector.shape_cast %358 : vector<1x16x72xf32> to vector<16x72xf32>
    %360 = vector.extract_strided_slice %2 {offsets = [38, 0], sizes = [1, 72], strides = [1, 1]} : vector<49x72xf32> to vector<1x72xf32>
    %361 = vector.broadcast %360 : vector<1x72xf32> to vector<16x72xf32>
    %362 = arith.mulf %359, %361 : vector<16x72xf32>
    %363 = arith.addf %353, %362 : vector<16x72xf32>
    %364 = vector.extract_strided_slice %1 {offsets = [22, 0], sizes = [1, 72], strides = [1, 1]} : vector<25x72xf32> to vector<1x72xf32>
    %365 = vector.broadcast %364 : vector<1x72xf32> to vector<16x72xf32>
    %366 = arith.mulf %359, %365 : vector<16x72xf32>
    %367 = arith.addf %357, %366 : vector<16x72xf32>
    %c0_114 = arith.constant 0 : index
    %c5_115 = arith.constant 5 : index
    %c16_116 = arith.constant 16 : index
    %368 = vector.load %arg1[%c0_114, %c5_115, %c16_116] : memref<1x22x96xf32, #tpu.memory_space<vmem>>, vector<1x16x72xf32>
    %369 = vector.shape_cast %368 : vector<1x16x72xf32> to vector<16x72xf32>
    %370 = vector.extract_strided_slice %2 {offsets = [39, 0], sizes = [1, 72], strides = [1, 1]} : vector<49x72xf32> to vector<1x72xf32>
    %371 = vector.broadcast %370 : vector<1x72xf32> to vector<16x72xf32>
    %372 = arith.mulf %369, %371 : vector<16x72xf32>
    %373 = arith.addf %363, %372 : vector<16x72xf32>
    %374 = vector.extract_strided_slice %1 {offsets = [23, 0], sizes = [1, 72], strides = [1, 1]} : vector<25x72xf32> to vector<1x72xf32>
    %375 = vector.broadcast %374 : vector<1x72xf32> to vector<16x72xf32>
    %376 = arith.mulf %369, %375 : vector<16x72xf32>
    %377 = arith.addf %367, %376 : vector<16x72xf32>
    %c0_117 = arith.constant 0 : index
    %c5_118 = arith.constant 5 : index
    %c20_119 = arith.constant 20 : index
    %378 = vector.load %arg1[%c0_117, %c5_118, %c20_119] : memref<1x22x96xf32, #tpu.memory_space<vmem>>, vector<1x16x72xf32>
    %379 = vector.shape_cast %378 : vector<1x16x72xf32> to vector<16x72xf32>
    %380 = vector.extract_strided_slice %2 {offsets = [40, 0], sizes = [1, 72], strides = [1, 1]} : vector<49x72xf32> to vector<1x72xf32>
    %381 = vector.broadcast %380 : vector<1x72xf32> to vector<16x72xf32>
    %382 = arith.mulf %379, %381 : vector<16x72xf32>
    %383 = arith.addf %373, %382 : vector<16x72xf32>
    %384 = vector.extract_strided_slice %1 {offsets = [24, 0], sizes = [1, 72], strides = [1, 1]} : vector<25x72xf32> to vector<1x72xf32>
    %385 = vector.broadcast %384 : vector<1x72xf32> to vector<16x72xf32>
    %386 = arith.mulf %379, %385 : vector<16x72xf32>
    %387 = arith.addf %377, %386 : vector<16x72xf32>
    %c0_120 = arith.constant 0 : index
    %c5_121 = arith.constant 5 : index
    %c24_122 = arith.constant 24 : index
    %388 = vector.load %arg1[%c0_120, %c5_121, %c24_122] : memref<1x22x96xf32, #tpu.memory_space<vmem>>, vector<1x16x72xf32>
    %389 = vector.shape_cast %388 : vector<1x16x72xf32> to vector<16x72xf32>
    %390 = vector.extract_strided_slice %2 {offsets = [41, 0], sizes = [1, 72], strides = [1, 1]} : vector<49x72xf32> to vector<1x72xf32>
    %391 = vector.broadcast %390 : vector<1x72xf32> to vector<16x72xf32>
    %392 = arith.mulf %389, %391 : vector<16x72xf32>
    %393 = arith.addf %383, %392 : vector<16x72xf32>
    %c0_123 = arith.constant 0 : index
    %c6 = arith.constant 6 : index
    %c0_124 = arith.constant 0 : index
    %394 = vector.load %arg1[%c0_123, %c6, %c0_124] : memref<1x22x96xf32, #tpu.memory_space<vmem>>, vector<1x16x72xf32>
    %395 = vector.shape_cast %394 : vector<1x16x72xf32> to vector<16x72xf32>
    %396 = vector.extract_strided_slice %2 {offsets = [42, 0], sizes = [1, 72], strides = [1, 1]} : vector<49x72xf32> to vector<1x72xf32>
    %397 = vector.broadcast %396 : vector<1x72xf32> to vector<16x72xf32>
    %398 = arith.mulf %395, %397 : vector<16x72xf32>
    %399 = arith.addf %393, %398 : vector<16x72xf32>
    %c0_125 = arith.constant 0 : index
    %c6_126 = arith.constant 6 : index
    %c4_127 = arith.constant 4 : index
    %400 = vector.load %arg1[%c0_125, %c6_126, %c4_127] : memref<1x22x96xf32, #tpu.memory_space<vmem>>, vector<1x16x72xf32>
    %401 = vector.shape_cast %400 : vector<1x16x72xf32> to vector<16x72xf32>
    %402 = vector.extract_strided_slice %2 {offsets = [43, 0], sizes = [1, 72], strides = [1, 1]} : vector<49x72xf32> to vector<1x72xf32>
    %403 = vector.broadcast %402 : vector<1x72xf32> to vector<16x72xf32>
    %404 = arith.mulf %401, %403 : vector<16x72xf32>
    %405 = arith.addf %399, %404 : vector<16x72xf32>
    %c0_128 = arith.constant 0 : index
    %c6_129 = arith.constant 6 : index
    %c8_130 = arith.constant 8 : index
    %406 = vector.load %arg1[%c0_128, %c6_129, %c8_130] : memref<1x22x96xf32, #tpu.memory_space<vmem>>, vector<1x16x72xf32>
    %407 = vector.shape_cast %406 : vector<1x16x72xf32> to vector<16x72xf32>
    %408 = vector.extract_strided_slice %2 {offsets = [44, 0], sizes = [1, 72], strides = [1, 1]} : vector<49x72xf32> to vector<1x72xf32>
    %409 = vector.broadcast %408 : vector<1x72xf32> to vector<16x72xf32>
    %410 = arith.mulf %407, %409 : vector<16x72xf32>
    %411 = arith.addf %405, %410 : vector<16x72xf32>
    %c0_131 = arith.constant 0 : index
    %c6_132 = arith.constant 6 : index
    %c12_133 = arith.constant 12 : index
    %412 = vector.load %arg1[%c0_131, %c6_132, %c12_133] : memref<1x22x96xf32, #tpu.memory_space<vmem>>, vector<1x16x72xf32>
    %413 = vector.shape_cast %412 : vector<1x16x72xf32> to vector<16x72xf32>
    %414 = vector.extract_strided_slice %2 {offsets = [45, 0], sizes = [1, 72], strides = [1, 1]} : vector<49x72xf32> to vector<1x72xf32>
    %415 = vector.broadcast %414 : vector<1x72xf32> to vector<16x72xf32>
    %416 = arith.mulf %413, %415 : vector<16x72xf32>
    %417 = arith.addf %411, %416 : vector<16x72xf32>
    %c0_134 = arith.constant 0 : index
    %c6_135 = arith.constant 6 : index
    %c16_136 = arith.constant 16 : index
    %418 = vector.load %arg1[%c0_134, %c6_135, %c16_136] : memref<1x22x96xf32, #tpu.memory_space<vmem>>, vector<1x16x72xf32>
    %419 = vector.shape_cast %418 : vector<1x16x72xf32> to vector<16x72xf32>
    %420 = vector.extract_strided_slice %2 {offsets = [46, 0], sizes = [1, 72], strides = [1, 1]} : vector<49x72xf32> to vector<1x72xf32>
    %421 = vector.broadcast %420 : vector<1x72xf32> to vector<16x72xf32>
    %422 = arith.mulf %419, %421 : vector<16x72xf32>
    %423 = arith.addf %417, %422 : vector<16x72xf32>
    %c0_137 = arith.constant 0 : index
    %c6_138 = arith.constant 6 : index
    %c20_139 = arith.constant 20 : index
    %424 = vector.load %arg1[%c0_137, %c6_138, %c20_139] : memref<1x22x96xf32, #tpu.memory_space<vmem>>, vector<1x16x72xf32>
    %425 = vector.shape_cast %424 : vector<1x16x72xf32> to vector<16x72xf32>
    %426 = vector.extract_strided_slice %2 {offsets = [47, 0], sizes = [1, 72], strides = [1, 1]} : vector<49x72xf32> to vector<1x72xf32>
    %427 = vector.broadcast %426 : vector<1x72xf32> to vector<16x72xf32>
    %428 = arith.mulf %425, %427 : vector<16x72xf32>
    %429 = arith.addf %423, %428 : vector<16x72xf32>
    %c0_140 = arith.constant 0 : index
    %c6_141 = arith.constant 6 : index
    %c24_142 = arith.constant 24 : index
    %430 = vector.load %arg1[%c0_140, %c6_141, %c24_142] : memref<1x22x96xf32, #tpu.memory_space<vmem>>, vector<1x16x72xf32>
    %431 = vector.shape_cast %430 : vector<1x16x72xf32> to vector<16x72xf32>
    %432 = vector.extract_strided_slice %2 {offsets = [48, 0], sizes = [1, 72], strides = [1, 1]} : vector<49x72xf32> to vector<1x72xf32>
    %433 = vector.broadcast %432 : vector<1x72xf32> to vector<16x72xf32>
    %434 = arith.mulf %431, %433 : vector<16x72xf32>
    %435 = arith.addf %429, %434 : vector<16x72xf32>
    %c0_143 = arith.constant 0 : index
    %c3_144 = arith.constant 3 : index
    %c12_145 = arith.constant 12 : index
    %436 = vector.load %arg1[%c0_143, %c3_144, %c12_145] : memref<1x22x96xf32, #tpu.memory_space<vmem>>, vector<1x16x72xf32>
    %437 = vector.shape_cast %436 : vector<1x16x72xf32> to vector<16x72xf32>
    %c0_146 = arith.constant 0 : index
    %c0_147 = arith.constant 0 : index
    %438 = vector.load %arg3[%c0_146, %c0_147] : memref<1x72xf32, #tpu.memory_space<vmem>>, vector<1x72xf32>
    %439 = vector.broadcast %438 : vector<1x72xf32> to vector<16x72xf32>
    %440 = arith.addf %315, %439 : vector<16x72xf32>
    %cst_148 = arith.constant 0.000000e+00 : f32
    %441 = vector.broadcast %cst_148 : f32 to vector<16x72xf32>
    %442 = arith.maximumf %440, %441 : vector<16x72xf32>
    %c0_149 = arith.constant 0 : index
    %c0_150 = arith.constant 0 : index
    %443 = vector.load %arg5[%c0_149, %c0_150] : memref<1x72xf32, #tpu.memory_space<vmem>>, vector<1x72xf32>
    %444 = vector.broadcast %443 : vector<1x72xf32> to vector<16x72xf32>
    %445 = arith.addf %387, %444 : vector<16x72xf32>
    %cst_151 = arith.constant 0.000000e+00 : f32
    %446 = vector.broadcast %cst_151 : f32 to vector<16x72xf32>
    %447 = arith.maximumf %445, %446 : vector<16x72xf32>
    %448 = arith.addf %442, %447 : vector<16x72xf32>
    %c0_152 = arith.constant 0 : index
    %c0_153 = arith.constant 0 : index
    %449 = vector.load %arg7[%c0_152, %c0_153] : memref<1x72xf32, #tpu.memory_space<vmem>>, vector<1x72xf32>
    %450 = vector.broadcast %449 : vector<1x72xf32> to vector<16x72xf32>
    %451 = arith.addf %435, %450 : vector<16x72xf32>
    %cst_154 = arith.constant 0.000000e+00 : f32
    %452 = vector.broadcast %cst_154 : f32 to vector<16x72xf32>
    %453 = arith.maximumf %451, %452 : vector<16x72xf32>
    %454 = arith.addf %448, %453 : vector<16x72xf32>
    %455 = arith.addf %454, %437 : vector<16x72xf32>
    %cst_155 = arith.constant 0.000000e+00 : f32
    %456 = vector.broadcast %cst_155 : f32 to vector<1x72xf32>
    %c0_156 = arith.constant 0 : index
    %c0_157 = arith.constant 0 : index
    %457 = vector.load %arg11[%c0_156, %c0_157] : memref<18x72xf32, #tpu.memory_space<vmem>>, vector<1x72xf32>
    tpu.vector_store %arg11[%c0_156, %c0_157], %456 {strides = array<i32>} : memref<18x72xf32, #tpu.memory_space<vmem>>, vector<1x72xf32>,
    %c17 = arith.constant 17 : index
    %c0_158 = arith.constant 0 : index
    %458 = vector.load %arg11[%c17, %c0_158] : memref<18x72xf32, #tpu.memory_space<vmem>>, vector<1x72xf32>
    tpu.vector_store %arg11[%c17, %c0_158], %456 {strides = array<i32>} : memref<18x72xf32, #tpu.memory_space<vmem>>, vector<1x72xf32>,
    %c1_159 = arith.constant 1 : index
    %c0_160 = arith.constant 0 : index
    %459 = vector.load %arg11[%c1_159, %c0_160] : memref<18x72xf32, #tpu.memory_space<vmem>>, vector<16x72xf32>
    tpu.vector_store %arg11[%c1_159, %c0_160], %455 {strides = array<i32>} : memref<18x72xf32, #tpu.memory_space<vmem>>, vector<16x72xf32>,
    %c0_161 = arith.constant 0 : index
    %c0_162 = arith.constant 0 : index
    %460 = vector.load %arg9[%c0_161, %c0_162] : memref<1x256xf32, #tpu.memory_space<vmem>>, vector<1x256xf32>
    %461 = vector.shape_cast %460 : vector<1x256xf32> to vector<1x256xf32>
    %462 = vector.broadcast %461 : vector<1x256xf32> to vector<16x256xf32>
    %c0_163 = arith.constant 0 : index
    %c0_164 = arith.constant 0 : index
    %463 = vector.load %arg11[%c0_163, %c0_164] : memref<18x72xf32, #tpu.memory_space<vmem>>, vector<16x72xf32>
    %464 = arith.truncf %463 : vector<16x72xf32> to vector<16x72xbf16>
    %c0_165 = arith.constant 0 : index
    %c0_166 = arith.constant 0 : index
    %c0_167 = arith.constant 0 : index
    %465 = vector.load %arg8[%c0_165, %c0_166, %c0_167] : memref<3x72x256xbf16, #tpu.memory_space<vmem>>, vector<1x72x256xbf16>
    %466 = vector.shape_cast %465 : vector<1x72x256xbf16> to vector<72x256xbf16>
    %cst_168 = arith.constant dense<0.000000e+00> : vector<16x256xf32>
    %467 = tpu.matmul %464, %466, %cst_168 {dimension_numbers = #tpu.dot_dimension_numbers<[1], [0], [0], [1], [0, 0, 1, 1], [], []>} : vector<16x72xbf16>, vector<72x256xbf16>, vector<16x256xf32> -> vector<16x256xf32>
    %468 = arith.addf %462, %467 : vector<16x256xf32>
    %c1_169 = arith.constant 1 : index
    %c0_170 = arith.constant 0 : index
    %469 = vector.load %arg11[%c1_169, %c0_170] : memref<18x72xf32, #tpu.memory_space<vmem>>, vector<16x72xf32>
    %470 = arith.truncf %469 : vector<16x72xf32> to vector<16x72xbf16>
    %c1_171 = arith.constant 1 : index
    %c0_172 = arith.constant 0 : index
    %c0_173 = arith.constant 0 : index
    %471 = vector.load %arg8[%c1_171, %c0_172, %c0_173] : memref<3x72x256xbf16, #tpu.memory_space<vmem>>, vector<1x72x256xbf16>
    %472 = vector.shape_cast %471 : vector<1x72x256xbf16> to vector<72x256xbf16>
    %cst_174 = arith.constant dense<0.000000e+00> : vector<16x256xf32>
    %473 = tpu.matmul %470, %472, %cst_174 {dimension_numbers = #tpu.dot_dimension_numbers<[1], [0], [0], [1], [0, 0, 1, 1], [], []>} : vector<16x72xbf16>, vector<72x256xbf16>, vector<16x256xf32> -> vector<16x256xf32>
    %474 = arith.addf %468, %473 : vector<16x256xf32>
    %c2_175 = arith.constant 2 : index
    %c0_176 = arith.constant 0 : index
    %475 = vector.load %arg11[%c2_175, %c0_176] : memref<18x72xf32, #tpu.memory_space<vmem>>, vector<16x72xf32>
    %476 = arith.truncf %475 : vector<16x72xf32> to vector<16x72xbf16>
    %c2_177 = arith.constant 2 : index
    %c0_178 = arith.constant 0 : index
    %c0_179 = arith.constant 0 : index
    %477 = vector.load %arg8[%c2_177, %c0_178, %c0_179] : memref<3x72x256xbf16, #tpu.memory_space<vmem>>, vector<1x72x256xbf16>
    %478 = vector.shape_cast %477 : vector<1x72x256xbf16> to vector<72x256xbf16>
    %cst_180 = arith.constant dense<0.000000e+00> : vector<16x256xf32>
    %479 = tpu.matmul %476, %478, %cst_180 {dimension_numbers = #tpu.dot_dimension_numbers<[1], [0], [0], [1], [0, 0, 1, 1], [], []>} : vector<16x72xbf16>, vector<72x256xbf16>, vector<16x256xf32> -> vector<16x256xf32>
    %480 = arith.addf %474, %479 : vector<16x256xf32>
    %481 = vector.extract_strided_slice %480 {offsets = [0, 0], sizes = [16, 128], strides = [1, 1]} : vector<16x256xf32> to vector<16x128xf32>
    %cst_181 = arith.constant 0.000000e+00 : f32
    %482 = vector.broadcast %cst_181 : f32 to vector<16x128xf32>
    %483 = arith.maximumf %481, %482 : vector<16x128xf32>
    %484 = vector.extract_strided_slice %480 {offsets = [0, 128], sizes = [16, 128], strides = [1, 1]} : vector<16x256xf32> to vector<16x128xf32>
    %485 = arith.negf %484 : vector<16x128xf32>
    %486 = math.exp %485 : vector<16x128xf32>
    %cst_182 = arith.constant 1.000000e+00 : f32
    %487 = vector.broadcast %cst_182 : f32 to vector<16x128xf32>
    %488 = arith.addf %487, %486 : vector<16x128xf32>
    %489 = arith.divf %487, %488 : vector<16x128xf32>
    %490 = arith.mulf %483, %489 : vector<16x128xf32>
    %c0_183 = arith.constant 0 : index
    %c0_184 = arith.constant 0 : index
    %c0_185 = arith.constant 0 : index
    %491 = vector.load %arg10[%c0_183, %c0_184, %c0_185] : memref<1x16x128xf32, #tpu.memory_space<vmem>>, vector<1x16x128xf32>
    %492 = vector.shape_cast %491 : vector<1x16x128xf32> to vector<16x128xf32>
    %493 = vector.shape_cast %490 : vector<16x128xf32> to vector<1x16x128xf32>
    tpu.vector_store %arg10[%c0_183, %c0_184, %c0_185], %493 {strides = array<i32>} : memref<1x16x128xf32, #tpu.memory_space<vmem>>, vector<1x16x128xf32>,
    return
  }
  func.func @transform_0(%arg0: i32) -> (i32, i32, i32) {
    %c0_i32 = arith.constant 0 : i32
    %c0_i32_0 = arith.constant 0 : i32
    %c0_i32_1 = arith.constant 0 : i32
    return %arg0, %c0_i32, %c0_i32_0 : i32, i32, i32
  }
  func.func @transform_1(%arg0: i32) -> (i32, i32) {
    %c0_i32 = arith.constant 0 : i32
    %c0_i32_0 = arith.constant 0 : i32
    %c0_i32_1 = arith.constant 0 : i32
    return %c0_i32, %c0_i32_0 : i32, i32
  }
  func.func @transform_2(%arg0: i32) -> (i32, i32) {
    %c0_i32 = arith.constant 0 : i32
    %c0_i32_0 = arith.constant 0 : i32
    %c0_i32_1 = arith.constant 0 : i32
    return %c0_i32, %c0_i32_0 : i32, i32
  }
  func.func @transform_3(%arg0: i32) -> (i32, i32) {
    %c0_i32 = arith.constant 0 : i32
    %c0_i32_0 = arith.constant 0 : i32
    %c0_i32_1 = arith.constant 0 : i32
    return %c0_i32, %c0_i32_0 : i32, i32
  }
  func.func @transform_4(%arg0: i32) -> (i32, i32) {
    %c0_i32 = arith.constant 0 : i32
    %c0_i32_0 = arith.constant 0 : i32
    %c0_i32_1 = arith.constant 0 : i32
    return %c0_i32, %c0_i32_0 : i32, i32
  }
  func.func @transform_5(%arg0: i32) -> (i32, i32) {
    %c0_i32 = arith.constant 0 : i32
    %c0_i32_0 = arith.constant 0 : i32
    %c0_i32_1 = arith.constant 0 : i32
    return %c0_i32, %c0_i32_0 : i32, i32
  }
  func.func @transform_6(%arg0: i32) -> (i32, i32) {
    %c0_i32 = arith.constant 0 : i32
    %c0_i32_0 = arith.constant 0 : i32
    %c0_i32_1 = arith.constant 0 : i32
    return %c0_i32, %c0_i32_0 : i32, i32
  }
  func.func @transform_7(%arg0: i32) -> (i32, i32, i32) {
    %c0_i32 = arith.constant 0 : i32
    %c0_i32_0 = arith.constant 0 : i32
    %c0_i32_1 = arith.constant 0 : i32
    %c0_i32_2 = arith.constant 0 : i32
    return %c0_i32, %c0_i32_0, %c0_i32_1 : i32, i32, i32
  }
  func.func @transform_8(%arg0: i32) -> (i32, i32) {
    %c0_i32 = arith.constant 0 : i32
    %c0_i32_0 = arith.constant 0 : i32
    %c0_i32_1 = arith.constant 0 : i32
    return %c0_i32, %c0_i32_0 : i32, i32
  }
  func.func @transform_9(%arg0: i32) -> (i32, i32, i32) {
    %c0_i32 = arith.constant 0 : i32
    %c0_i32_0 = arith.constant 0 : i32
    %c0_i32_1 = arith.constant 0 : i32
    return %arg0, %c0_i32, %c0_i32_0 : i32, i32, i32
  }
}

</mosaic_0001>

<llo_original>
// kernel: tpu_custom_call.1
$region0: #{tpu_custom_call.1}
  #allocation0 [shape = 'u32[]', space=smem, size = 0x4, offset = 0x4, fixed_abs, tag = 'smem constant byte address 0x4 - core index']
  #allocation1 [shape = 'u32[144,128]{1,0:T(1,128)}', space=vmem, size = 0x12000, scoped, tag = 'internal scratch']
  #allocation2 [shape = 'f32[18,72]{1,0:T(8,128)}', space=vmem, size = 0x3000, scoped, tag = 'scratch operand']
  %s0 = inlined_call_operand.vmem [shape: f32[2,22,96], index: 0, kind: input, shape index: {}]
  %s1 = inlined_call_operand.vmem [shape: f32[9,72], index: 1, kind: input, shape index: {}]
  %s2 = inlined_call_operand.vmem [shape: f32[1,72], index: 2, kind: input, shape index: {}]
  %s3 = inlined_call_operand.vmem [shape: f32[25,72], index: 3, kind: input, shape index: {}]
  %s4 = inlined_call_operand.vmem [shape: f32[1,72], index: 4, kind: input, shape index: {}]
  %s5 = inlined_call_operand.vmem [shape: f32[49,72], index: 5, kind: input, shape index: {}]
  %s6 = inlined_call_operand.vmem [shape: f32[1,72], index: 6, kind: input, shape index: {}]
  %s7 = inlined_call_operand.hbm [shape: bf16[3,72,256], index: 7, kind: input, shape index: {}]
  %s8 = inlined_call_operand.vmem [shape: f32[1,256], index: 8, kind: input, shape index: {}]
  %s9 = inlined_call_operand.hbm [shape: f32[2,16,128], index: 9, kind: output, shape index: {}]
  %s10 = sld [smem:[#allocation0]]
  $region73: #{tpu_custom_call.1} parent=0
    _
  %s12 = ssub.s32 1, %s10
  %s13 = scalar_select 0, %s12, %s10
  $region1: #{tpu_custom_call.1} parent=0
    #allocation3 [shape = 'u8[110592]{0}', space=vmem, size = 0x1b000, scoped, tag = 'input window, operand 7, single buffered']
    #allocation4 [shape = 's32[2]{0}', space=sflag, size = 0x8, scoped, tag = 'scoped memory for tpu_custom_call.1']
    #allocation5 [shape = 's32[2]{0}', space=sflag, size = 0x8, scoped, tag = 'scoped memory for tpu_custom_call.1']
    #allocation6 [shape = 'u8[16384]{0}', space=vmem, size = 0x4000, scoped, tag = 'output window, operand 0']
    %14 = vsyncpa [#allocation4], 0
    %15 = vsyncpa [#allocation5], 0
    %s16 = scalar_lea.sflag [#allocation5], 1
    %17 = vsyncpa %s16, 0
    loop: start=0, step=1, limit=4
    $region2: #{tpu_custom_call.1} parent=1 // loop_pre_header
      _
    $region3: #{tpu_custom_call.1} parent=1 // loop_header
      %s19 = sphi 0, %s23
      %p20 = scmp.ge.s32.totalorder %s19, 4
      %s29 = sphi 0, %s31
      %s32 = sphi 0, %s29
      %s33 = sphi 0, %s32
      %s49 = sphi 0, %s33
      %s53 = sphi 0, %s53
      %s55 = sphi 0, %s53
      %s56 = sphi 0, %s55
      %s70 = sphi 0, %s56
      %s74 = sphi 0, %s74
      %s76 = sphi 0, %s74
      %s77 = sphi 0, %s76
      %s91 = sphi 0, %s77
      %s95 = sphi 0, %s95
      %s97 = sphi 0, %s95
      %s98 = sphi 0, %s97
      %s112 = sphi 0, %s98
      %s116 = sphi 0, %s116
      %s118 = sphi 0, %s116
      %s119 = sphi 0, %s118
      %s133 = sphi 0, %s119
      %s137 = sphi 0, %s137
      %s139 = sphi 0, %s137
      %s140 = sphi 0, %s139
      %s154 = sphi 0, %s140
      %s158 = sphi 0, %s158
      %s160 = sphi 0, %s158
      %s161 = sphi 0, %s160
      %s175 = sphi 0, %s161
      %s179 = sphi 0, %s179
      %s181 = sphi 0, %s179
      %s182 = sphi 0, %s181
      %s196 = sphi 0, %s182
      %s200 = sphi 0, %s200
      %s202 = sphi 0, %s200
      %s203 = sphi 0, %s202
      %s217 = sphi 0, %s203
      %s223 = sphi 0, %s225
      %s226 = sphi 0, %s223
      %s227 = sphi 0, %s226
      %s243 = sphi 0, %s227
    $region4: #{tpu_custom_call.1} parent=1 // loop_header_branch
      %22 = sbr.rel (%p20) target = $region8
    $region5: #{tpu_custom_call.1} parent=1 // loop_body
      %s24 = ssub.s32 %s19, 1
      %s25 = ssub.s32 %s19, 2
      %s26 = sadd.s32 %s19, 1
      %s27 = ssub.s32 %s19, %s26
      %p28 = scmp.eq.s32.totalorder %s27, 0
      %s30 = sadd.s32 %s29, 1
      %s31 = scalar_select %p28, %s29, %s30
      %p34 = pneg %p28
      %p35 = scmp.eq.s32.totalorder %s19, 1
      %p36 = por %p34, %p35
      %p37 = scmp.ne.s32.totalorder %s29, %s32
      %p38 = scmp.eq.s32.totalorder %s19, 0
      %p39 = por %p37, %p38
      %p40 = scmp.ne.s32.totalorder %s29, %s32
      %p41 = scmp.eq.s32.totalorder %s24, 1
      %p42 = por %p40, %p41
      %p43 = scmp.ne.s32.totalorder %s32, %s33
      %p44 = scmp.eq.s32.totalorder %s24, 0
      %p45 = por %p43, %p44
      %p46 = scmp.ne.s32.totalorder %s32, %s33
      %p47 = scmp.eq.s32.totalorder %s25, 1
      %p48 = por %p46, %p47
      %p50 = scmp.ne.s32.totalorder %s33, %s49
      %p51 = scmp.eq.s32.totalorder %s25, 0
      %p52 = por %p50, %p51
      %s54 = sadd.s32 %s53, 1
      %p57 = scmp.eq.s32.totalorder %s19, 1
      %p58 = scmp.ne.s32.totalorder %s53, %s55
      %p59 = scmp.eq.s32.totalorder %s19, 0
      %p60 = por %p58, %p59
      %p61 = scmp.ne.s32.totalorder %s53, %s55
      %p62 = scmp.eq.s32.totalorder %s24, 1
      %p63 = por %p61, %p62
      %p64 = scmp.ne.s32.totalorder %s55, %s56
      %p65 = scmp.eq.s32.totalorder %s24, 0
      %p66 = por %p64, %p65
      %p67 = scmp.ne.s32.totalorder %s55, %s56
      %p68 = scmp.eq.s32.totalorder %s25, 1
      %p69 = por %p67, %p68
      %p71 = scmp.ne.s32.totalorder %s56, %s70
      %p72 = scmp.eq.s32.totalorder %s25, 0
      %p73 = por %p71, %p72
      %s75 = sadd.s32 %s74, 1
      %p78 = scmp.eq.s32.totalorder %s19, 1
      %p79 = scmp.ne.s32.totalorder %s74, %s76
      %p80 = scmp.eq.s32.totalorder %s19, 0
      %p81 = por %p79, %p80
      %p82 = scmp.ne.s32.totalorder %s74, %s76
      %p83 = scmp.eq.s32.totalorder %s24, 1
      %p84 = por %p82, %p83
      %p85 = scmp.ne.s32.totalorder %s76, %s77
      %p86 = scmp.eq.s32.totalorder %s24, 0
      %p87 = por %p85, %p86
      %p88 = scmp.ne.s32.totalorder %s76, %s77
      %p89 = scmp.eq.s32.totalorder %s25, 1
      %p90 = por %p88, %p89
      %p92 = scmp.ne.s32.totalorder %s77, %s91
      %p93 = scmp.eq.s32.totalorder %s25, 0
      %p94 = por %p92, %p93
      %s96 = sadd.s32 %s95, 1
      %p99 = scmp.eq.s32.totalorder %s19, 1
      %p100 = scmp.ne.s32.totalorder %s95, %s97
      %p101 = scmp.eq.s32.totalorder %s19, 0
      %p102 = por %p100, %p101
      %p103 = scmp.ne.s32.totalorder %s95, %s97
      %p104 = scmp.eq.s32.totalorder %s24, 1
      %p105 = por %p103, %p104
      %p106 = scmp.ne.s32.totalorder %s97, %s98
      %p107 = scmp.eq.s32.totalorder %s24, 0
      %p108 = por %p106, %p107
      %p109 = scmp.ne.s32.totalorder %s97, %s98
      %p110 = scmp.eq.s32.totalorder %s25, 1
      %p111 = por %p109, %p110
      %p113 = scmp.ne.s32.totalorder %s98, %s112
      %p114 = scmp.eq.s32.totalorder %s25, 0
      %p115 = por %p113, %p114
      %s117 = sadd.s32 %s116, 1
      %p120 = scmp.eq.s32.totalorder %s19, 1
      %p121 = scmp.ne.s32.totalorder %s116, %s118
      %p122 = scmp.eq.s32.totalorder %s19, 0
      %p123 = por %p121, %p122
      %p124 = scmp.ne.s32.totalorder %s116, %s118
      %p125 = scmp.eq.s32.totalorder %s24, 1
      %p126 = por %p124, %p125
      %p127 = scmp.ne.s32.totalorder %s118, %s119
      %p128 = scmp.eq.s32.totalorder %s24, 0
      %p129 = por %p127, %p128
      %p130 = scmp.ne.s32.totalorder %s118, %s119
      %p131 = scmp.eq.s32.totalorder %s25, 1
      %p132 = por %p130, %p131
      %p134 = scmp.ne.s32.totalorder %s119, %s133
      %p135 = scmp.eq.s32.totalorder %s25, 0
      %p136 = por %p134, %p135
      %s138 = sadd.s32 %s137, 1
      %p141 = scmp.eq.s32.totalorder %s19, 1
      %p142 = scmp.ne.s32.totalorder %s137, %s139
      %p143 = scmp.eq.s32.totalorder %s19, 0
      %p144 = por %p142, %p143
      %p145 = scmp.ne.s32.totalorder %s137, %s139
      %p146 = scmp.eq.s32.totalorder %s24, 1
      %p147 = por %p145, %p146
      %p148 = scmp.ne.s32.totalorder %s139, %s140
      %p149 = scmp.eq.s32.totalorder %s24, 0
      %p150 = por %p148, %p149
      %p151 = scmp.ne.s32.totalorder %s139, %s140
      %p152 = scmp.eq.s32.totalorder %s25, 1
      %p153 = por %p151, %p152
      %p155 = scmp.ne.s32.totalorder %s140, %s154
      %p156 = scmp.eq.s32.totalorder %s25, 0
      %p157 = por %p155, %p156
      %s159 = sadd.s32 %s158, 1
      %p162 = scmp.eq.s32.totalorder %s19, 1
      %p163 = scmp.ne.s32.totalorder %s158, %s160
      %p164 = scmp.eq.s32.totalorder %s19, 0
      %p165 = por %p163, %p164
      %p166 = scmp.ne.s32.totalorder %s158, %s160
      %p167 = scmp.eq.s32.totalorder %s24, 1
      %p168 = por %p166, %p167
      %p169 = scmp.ne.s32.totalorder %s160, %s161
      %p170 = scmp.eq.s32.totalorder %s24, 0
      %p171 = por %p169, %p170
      %p172 = scmp.ne.s32.totalorder %s160, %s161
      %p173 = scmp.eq.s32.totalorder %s25, 1
      %p174 = por %p172, %p173
      %p176 = scmp.ne.s32.totalorder %s161, %s175
      %p177 = scmp.eq.s32.totalorder %s25, 0
      %p178 = por %p176, %p177
      %s180 = sadd.s32 %s179, 1
      %p183 = scmp.eq.s32.totalorder %s19, 1
      %p184 = scmp.ne.s32.totalorder %s179, %s181
      %p185 = scmp.eq.s32.totalorder %s19, 0
      %p186 = por %p184, %p185
      %p187 = scmp.ne.s32.totalorder %s179, %s181
      %p188 = scmp.eq.s32.totalorder %s24, 1
      %p189 = por %p187, %p188
      %p190 = scmp.ne.s32.totalorder %s181, %s182
      %p191 = scmp.eq.s32.totalorder %s24, 0
      %p192 = por %p190, %p191
      %p193 = scmp.ne.s32.totalorder %s181, %s182
      %p194 = scmp.eq.s32.totalorder %s25, 1
      %p195 = por %p193, %p194
      %p197 = scmp.ne.s32.totalorder %s182, %s196
      %p198 = scmp.eq.s32.totalorder %s25, 0
      %p199 = por %p197, %p198
      %s201 = sadd.s32 %s200, 1
      %p204 = scmp.eq.s32.totalorder %s19, 1
      %p205 = scmp.ne.s32.totalorder %s200, %s202
      %p206 = scmp.eq.s32.totalorder %s19, 0
      %p207 = por %p205, %p206
      %p208 = scmp.ne.s32.totalorder %s200, %s202
      %p209 = scmp.eq.s32.totalorder %s24, 1
      %p210 = por %p208, %p209
      %p211 = scmp.ne.s32.totalorder %s202, %s203
      %p212 = scmp.eq.s32.totalorder %s24, 0
      %p213 = por %p211, %p212
      %p214 = scmp.ne.s32.totalorder %s202, %s203
      %p215 = scmp.eq.s32.totalorder %s25, 1
      %p216 = por %p214, %p215
      %p218 = scmp.ne.s32.totalorder %s203, %s217
      %p219 = scmp.eq.s32.totalorder %s25, 0
      %p220 = por %p218, %p219
      %s221 = ssub.s32 %s19, %s26
      %p222 = scmp.eq.s32.totalorder %s221, 0
      %s224 = sadd.s32 %s223, 1
      %s225 = scalar_select %p222, %s223, %s224
      %p228 = pneg %p222
      %p229 = scmp.eq.s32.totalorder %s19, 1
      %p230 = por %p228, %p229
      %p231 = scmp.ne.s32.totalorder %s223, %s226
      %p232 = scmp.eq.s32.totalorder %s19, 0
      %p233 = por %p231, %p232
      %p234 = scmp.ne.s32.totalorder %s223, %s226
      %p235 = scmp.eq.s32.totalorder %s24, 1
      %p236 = por %p234, %p235
      %p237 = scmp.ne.s32.totalorder %s226, %s227
      %p238 = scmp.eq.s32.totalorder %s24, 0
      %p239 = por %p237, %p238
      %p240 = scmp.ne.s32.totalorder %s226, %s227
      %p241 = scmp.eq.s32.totalorder %s25, 1
      %p242 = por %p240, %p241
      %p244 = scmp.ne.s32.totalorder %s227, %s243
      %p245 = scmp.eq.s32.totalorder %s25, 0
      %p246 = por %p244, %p245
      %p247 = scmp.le.s32.totalorder 1, %s19
      %p248 = scmp.lt.s32.totalorder %s19, 3
      %p249 = pnand %p247, %p248
      %p250 = pneg %p249
      // Predicated region
      $region9: #{tpu_custom_call.1} parent=5 // pred_check
        _
      $region10: #{tpu_custom_call.1} parent=5 // pred_check_branch
        %252 = sbr.rel (%p249) target = $region12
      $region11: #{tpu_custom_call.1} parent=5 // pred_region
        %s253 = ssub.s32 %s19, 1
        // Predicated region
        $region13: #{tpu_custom_call.1} parent=11 // pred_check
          %p254 = pneg %p66
        $region14: #{tpu_custom_call.1} parent=11 // pred_check_branch
          %256 = sbr.rel (%p254) target = $region16
        $region15: #{tpu_custom_call.1} parent=11 // pred_region
          _
        $region16: #{tpu_custom_call.1} parent=11 // pred_fallthru
          _
        // Predicated region
        $region17: #{tpu_custom_call.1} parent=11 // pred_check
          %p257 = pneg %p87
        $region18: #{tpu_custom_call.1} parent=11 // pred_check_branch
          %259 = sbr.rel (%p257) target = $region20
        $region19: #{tpu_custom_call.1} parent=11 // pred_region
          _
        $region20: #{tpu_custom_call.1} parent=11 // pred_fallthru
          _
        // Predicated region
        $region21: #{tpu_custom_call.1} parent=11 // pred_check
          %p260 = pneg %p108
        $region22: #{tpu_custom_call.1} parent=11 // pred_check_branch
          %262 = sbr.rel (%p260) target = $region24
        $region23: #{tpu_custom_call.1} parent=11 // pred_region
          _
        $region24: #{tpu_custom_call.1} parent=11 // pred_fallthru
          _
        // Predicated region
        $region25: #{tpu_custom_call.1} parent=11 // pred_check
          %p263 = pneg %p129
        $region26: #{tpu_custom_call.1} parent=11 // pred_check_branch
          %265 = sbr.rel (%p263) target = $region28
        $region27: #{tpu_custom_call.1} parent=11 // pred_region
          _
        $region28: #{tpu_custom_call.1} parent=11 // pred_fallthru
          _
        // Predicated region
        $region29: #{tpu_custom_call.1} parent=11 // pred_check
          %p266 = pneg %p150
        $region30: #{tpu_custom_call.1} parent=11 // pred_check_branch
          %268 = sbr.rel (%p266) target = $region32
        $region31: #{tpu_custom_call.1} parent=11 // pred_region
          _
        $region32: #{tpu_custom_call.1} parent=11 // pred_fallthru
          _
        // Predicated region
        $region33: #{tpu_custom_call.1} parent=11 // pred_check
          %p269 = pneg %p171
        $region34: #{tpu_custom_call.1} parent=11 // pred_check_branch
          %271 = sbr.rel (%p269) target = $region36
        $region35: #{tpu_custom_call.1} parent=11 // pred_region
          _
        $region36: #{tpu_custom_call.1} parent=11 // pred_fallthru
          _
        // Predicated region
        $region37: #{tpu_custom_call.1} parent=11 // pred_check
          %p272 = pneg %p192
        $region38: #{tpu_custom_call.1} parent=11 // pred_check_branch
          %274 = sbr.rel (%p272) target = $region40
        $region39: #{tpu_custom_call.1} parent=11 // pred_region
          %s276 = ssub.s32 3456, 3456
          %277 = vsyncadd [#allocation4], %s276
          %s278 = sshll.u32 [#allocation3], 4
          %s279 = int_to_ptr.vmem [resolvable:$true] %s278
          %284 = dma.hbm_to_vmem [thread:$0]  %s7, 3456, %s279, [#allocation4], 128, 128, 8
        $region40: #{tpu_custom_call.1} parent=11 // pred_fallthru
          _
        // Predicated region
        $region41: #{tpu_custom_call.1} parent=11 // pred_check
          %p285 = pneg %p213
        $region42: #{tpu_custom_call.1} parent=11 // pred_check_branch
          %287 = sbr.rel (%p285) target = $region44
        $region43: #{tpu_custom_call.1} parent=11 // pred_region
          _
        $region44: #{tpu_custom_call.1} parent=11 // pred_fallthru
          _
      $region12: #{tpu_custom_call.1} parent=5 // pred_fallthru
        _
      %p288 = scmp.lt.s32.totalorder %s19, 2
      // Predicated region
      $region45: #{tpu_custom_call.1} parent=5 // pred_check
        %p289 = pneg %p288
      $region46: #{tpu_custom_call.1} parent=5 // pred_check_branch
        %291 = sbr.rel (%p289) target = $region48
      $region47: #{tpu_custom_call.1} parent=5 // pred_region
        // Predicated region
        $region49: #{tpu_custom_call.1} parent=47 // pred_check
          %p292 = pneg %p39
        $region50: #{tpu_custom_call.1} parent=47 // pred_check_branch
          %294 = sbr.rel (%p292) target = $region52
        $region51: #{tpu_custom_call.1} parent=47 // pred_region
          %p295 = scmp.lt.s32.totalorder %s19, 1
          %s296 = scalar_select %p295, %s19, 1
          %s297 = smul.addr %s296, 3
          %s298 = smul.addr %s297, 8
          %s299 = scalar_lea.vmem %s0, %s298
        $region52: #{tpu_custom_call.1} parent=47 // pred_fallthru
          _
      $region48: #{tpu_custom_call.1} parent=5 // pred_fallthru
        _
      %p300 = scmp.le.s32.totalorder 1, %s19
      %p301 = scmp.lt.s32.totalorder %s19, 3
      %p302 = pnand %p300, %p301
      %p303 = pneg %p302
      // Predicated region
      $region53: #{tpu_custom_call.1} parent=5 // pred_check
        _
      $region54: #{tpu_custom_call.1} parent=5 // pred_check_branch
        %305 = sbr.rel (%p302) target = $region56
      $region55: #{tpu_custom_call.1} parent=5 // pred_region
        %s306 = ssub.s32 %s19, 1
        // Predicated region
        $region57: #{tpu_custom_call.1} parent=55 // pred_check
          %p307 = pneg %p192
        $region58: #{tpu_custom_call.1} parent=55 // pred_check_branch
          %309 = sbr.rel (%p307) target = $region60
        $region59: #{tpu_custom_call.1} parent=55 // pred_region
          %310 = dma.done [#allocation4], 3456
        $region60: #{tpu_custom_call.1} parent=55 // pred_fallthru
          _
        %p311 = scmp.lt.s32.totalorder %s24, 1
        %s312 = scalar_select %p311, %s24, 1
        %s313 = smul.addr %s312, 3
        %s314 = smul.addr %s313, 8
        %s315 = scalar_lea.vmem %s0, %s314
        %p316 = pneg %p45
        %p317 = pneg %p42
        %p318 = pneg %p66
        %p319 = pneg %p63
        %p320 = pneg %p87
        %p321 = pneg %p84
        %p322 = pneg %p108
        %p323 = pneg %p105
        %p324 = pneg %p129
        %p325 = pneg %p126
        %p326 = pneg %p150
        %p327 = pneg %p147
        %p328 = pneg %p171
        %p329 = pneg %p168
        %p330 = pneg %p192
        %p331 = pneg %p189
        %p332 = pneg %p213
        %p333 = pneg %p210
        %p334 = pneg %p239
        %p335 = pneg %p236
        %s336 = sand.u32 %s226, 1
        %s337 = scalar_lea.sflag [#allocation5], %s336
        %s338 = sand.u32 %s226, 1
        %s339 = smul.addr %s338, 16
        %s340 = scalar_lea.vmem [#allocation6], %s339
        %p341 = scmp.lt.s32.totalorder %s24, 1
        %s342 = scalar_select %p341, %s24, 1
        %s343 = smul.addr %s342, 3
        %s344 = smul.addr %s343, 8
        %s345 = scalar_lea.vmem %s0, %s344
        %v347 = vld [vmem:[%s1] sm:$0xff]
        %v348 = vld [vmem:[%s1 + $0x8] sm:$0x1]
        %v349 = vld [vmem:[%s3] sm:$0xff]
        %v350 = vld [vmem:[%s3 + $0x8] sm:$0xff]
        %v351 = vld [vmem:[%s3 + $0x10] sm:$0xff]
        %v352 = vld [vmem:[%s3 + $0x18] sm:$0x1]
        %v353 = vld [vmem:[%s5] sm:$0xff]
        %v354 = vld [vmem:[%s5 + $0x8] sm:$0xff]
        %v355 = vld [vmem:[%s5 + $0x10] sm:$0xff]
        %v356 = vld [vmem:[%s5 + $0x18] sm:$0xff]
        %v357 = vld [vmem:[%s5 + $0x20] sm:$0xff]
        %v358 = vld [vmem:[%s5 + $0x28] sm:$0xff]
        %v359 = vld [vmem:[%s5 + $0x30] sm:$0x1]
        %v360 = vld [vmem:[%s345] sm:$0xff]
        %v361 = vld [vmem:[%s345 + $0x8] sm:$0xff]
        %v362 = vlaneseq
        %v363 = vshrl.u32 %v362, 7
        %v364 = vsub.s32 0, %v363
        %v365 = vrot.slane %v353, %v364
        %v366 = vmul.f32 %v360, %v365
        %v367 = vmul.f32 %v361, %v365
        %v368 = vadd.f32 %v366, 0.0
        %v369 = vadd.f32 %v367, 0.0
        %v370 = vlaneseq
        %v371 = vshrl.u32 %v370, 7
        %v372 = vsub.s32 1, %v371
        %v373 = vrot.slane %v353, %v372
        %375 = vrot.lane.b32.xlu0 %v373, 4
        %v376 = vpop.permute.xlu0 %375
        %v378 = vmul.f32 %v360, %v376
        %v379 = vmul.f32 %v361, %v376
        %382 = vrot.lane.b32.xlu0 %v378, 124
        %v383 = vpop.permute.xlu0 %382
        %384 = vrot.lane.b32.xlu0 %v379, 124
        %v385 = vpop.permute.xlu0 %384
        %v388 = vadd.f32 %v368, %v383
        %v389 = vadd.f32 %v369, %v385
        %v390 = vlaneseq
        %v391 = vshrl.u32 %v390, 7
        %v392 = vsub.s32 2, %v391
        %v393 = vrot.slane %v353, %v392
        %395 = vrot.lane.b32.xlu0 %v393, 8
        %v396 = vpop.permute.xlu0 %395
        %v398 = vmul.f32 %v360, %v396
        %v399 = vmul.f32 %v361, %v396
        %402 = vrot.lane.b32.xlu0 %v398, 120
        %v403 = vpop.permute.xlu0 %402
        %404 = vrot.lane.b32.xlu0 %v399, 120
        %v405 = vpop.permute.xlu0 %404
        %v408 = vadd.f32 %v388, %v403
        %v409 = vadd.f32 %v389, %v405
        %v410 = vlaneseq
        %v411 = vshrl.u32 %v410, 7
        %v412 = vsub.s32 3, %v411
        %v413 = vrot.slane %v353, %v412
        %415 = vrot.lane.b32.xlu0 %v413, 12
        %v416 = vpop.permute.xlu0 %415
        %v418 = vmul.f32 %v360, %v416
        %v419 = vmul.f32 %v361, %v416
        %422 = vrot.lane.b32.xlu0 %v418, 116
        %v423 = vpop.permute.xlu0 %422
        %424 = vrot.lane.b32.xlu0 %v419, 116
        %v425 = vpop.permute.xlu0 %424
        %v428 = vadd.f32 %v408, %v423
        %v429 = vadd.f32 %v409, %v425
        %v430 = vlaneseq
        %v431 = vshrl.u32 %v430, 7
        %v432 = vsub.s32 4, %v431
        %v433 = vrot.slane %v353, %v432
        %435 = vrot.lane.b32.xlu0 %v433, 16
        %v436 = vpop.permute.xlu0 %435
        %v438 = vmul.f32 %v360, %v436
        %v439 = vmul.f32 %v361, %v436
        %442 = vrot.lane.b32.xlu0 %v438, 112
        %v443 = vpop.permute.xlu0 %442
        %444 = vrot.lane.b32.xlu0 %v439, 112
        %v445 = vpop.permute.xlu0 %444
        %v448 = vadd.f32 %v428, %v443
        %v449 = vadd.f32 %v429, %v445
        %v450 = vlaneseq
        %v451 = vshrl.u32 %v450, 7
        %v452 = vsub.s32 5, %v451
        %v453 = vrot.slane %v353, %v452
        %455 = vrot.lane.b32.xlu0 %v453, 20
        %v456 = vpop.permute.xlu0 %455
        %v458 = vmul.f32 %v360, %v456
        %v459 = vmul.f32 %v361, %v456
        %462 = vrot.lane.b32.xlu0 %v458, 108
        %v463 = vpop.permute.xlu0 %462
        %464 = vrot.lane.b32.xlu0 %v459, 108
        %v465 = vpop.permute.xlu0 %464
        %v468 = vadd.f32 %v448, %v463
        %v469 = vadd.f32 %v449, %v465
        %v470 = vlaneseq
        %v471 = vshrl.u32 %v470, 7
        %v472 = vsub.s32 6, %v471
        %v473 = vrot.slane %v353, %v472
        %475 = vrot.lane.b32.xlu0 %v473, 24
        %v476 = vpop.permute.xlu0 %475
        %v478 = vmul.f32 %v360, %v476
        %v479 = vmul.f32 %v361, %v476
        %482 = vrot.lane.b32.xlu0 %v478, 104
        %v483 = vpop.permute.xlu0 %482
        %484 = vrot.lane.b32.xlu0 %v479, 104
        %v485 = vpop.permute.xlu0 %484
        %v488 = vadd.f32 %v468, %v483
        %v489 = vadd.f32 %v469, %v485
        %v490 = vld [vmem:[%s345 + $0x1] sm:$0xff]
        %v491 = vld [vmem:[%s345 + $0x9] sm:$0xff]
        %v492 = vlaneseq
        %v493 = vshrl.u32 %v492, 7
        %v494 = vsub.s32 7, %v493
        %v495 = vrot.slane %v353, %v494
        %v496 = vmul.f32 %v490, %v495
        %v497 = vmul.f32 %v491, %v495
        %v498 = vadd.f32 %v488, %v496
        %v499 = vadd.f32 %v489, %v497
        %v500 = vlaneseq
        %v501 = vshrl.u32 %v500, 7
        %v502 = vsub.s32 0, %v501
        %v503 = vrot.slane %v354, %v502
        %505 = vrot.lane.b32.xlu0 %v503, 4
        %v506 = vpop.permute.xlu0 %505
        %v508 = vmul.f32 %v490, %v506
        %v509 = vmul.f32 %v491, %v506
        %512 = vrot.lane.b32.xlu0 %v508, 124
        %v513 = vpop.permute.xlu0 %512
        %514 = vrot.lane.b32.xlu0 %v509, 124
        %v515 = vpop.permute.xlu0 %514
        %v518 = vadd.f32 %v498, %v513
        %v519 = vadd.f32 %v499, %v515
        %v520 = vlaneseq
        %v521 = vshrl.u32 %v520, 7
        %v522 = vsub.s32 0, %v521
        %v523 = vrot.slane %v349, %v522
        %525 = vrot.lane.b32.xlu0 %v523, 4
        %v526 = vpop.permute.xlu0 %525
        %v528 = vmul.f32 %v490, %v526
        %v529 = vmul.f32 %v491, %v526
        %v530 = vadd.f32 %v528, 0.0
        %v531 = vadd.f32 %v529, 0.0
        %v532 = vlaneseq
        %v533 = vshrl.u32 %v532, 7
        %v534 = vsub.s32 1, %v533
        %v535 = vrot.slane %v354, %v534
        %537 = vrot.lane.b32.xlu0 %v535, 8
        %v538 = vpop.permute.xlu0 %537
        %v540 = vmul.f32 %v490, %v538
        %v541 = vmul.f32 %v491, %v538
        %544 = vrot.lane.b32.xlu0 %v540, 120
        %v545 = vpop.permute.xlu0 %544
        %546 = vrot.lane.b32.xlu0 %v541, 120
        %v547 = vpop.permute.xlu0 %546
        %v550 = vadd.f32 %v518, %v545
        %v551 = vadd.f32 %v519, %v547
        %v552 = vlaneseq
        %v553 = vshrl.u32 %v552, 7
        %v554 = vsub.s32 1, %v553
        %v555 = vrot.slane %v349, %v554
        %557 = vrot.lane.b32.xlu0 %v555, 8
        %v558 = vpop.permute.xlu0 %557
        %v560 = vmul.f32 %v490, %v558
        %v561 = vmul.f32 %v491, %v558
        %564 = vrot.lane.b32.xlu0 %v560, 124
        %v565 = vpop.permute.xlu0 %564
        %566 = vrot.lane.b32.xlu0 %v561, 124
        %v567 = vpop.permute.xlu0 %566
        %v570 = vadd.f32 %v530, %v565
        %v571 = vadd.f32 %v531, %v567
        %v572 = vlaneseq
        %v573 = vshrl.u32 %v572, 7
        %v574 = vsub.s32 2, %v573
        %v575 = vrot.slane %v354, %v574
        %577 = vrot.lane.b32.xlu0 %v575, 12
        %v578 = vpop.permute.xlu0 %577
        %v580 = vmul.f32 %v490, %v578
        %v581 = vmul.f32 %v491, %v578
        %584 = vrot.lane.b32.xlu0 %v580, 116
        %v585 = vpop.permute.xlu0 %584
        %586 = vrot.lane.b32.xlu0 %v581, 116
        %v587 = vpop.permute.xlu0 %586
        %v590 = vadd.f32 %v550, %v585
        %v591 = vadd.f32 %v551, %v587
        %v592 = vlaneseq
        %v593 = vshrl.u32 %v592, 7
        %v594 = vsub.s32 2, %v593
        %v595 = vrot.slane %v349, %v594
        %597 = vrot.lane.b32.xlu0 %v595, 12
        %v598 = vpop.permute.xlu0 %597
        %v600 = vmul.f32 %v490, %v598
        %v601 = vmul.f32 %v491, %v598
        %604 = vrot.lane.b32.xlu0 %v600, 120
        %v605 = vpop.permute.xlu0 %604
        %606 = vrot.lane.b32.xlu0 %v601, 120
        %v607 = vpop.permute.xlu0 %606
        %v610 = vadd.f32 %v570, %v605
        %v611 = vadd.f32 %v571, %v607
        %v612 = vlaneseq
        %v613 = vshrl.u32 %v612, 7
        %v614 = vsub.s32 3, %v613
        %v615 = vrot.slane %v354, %v614
        %617 = vrot.lane.b32.xlu0 %v615, 16
        %v618 = vpop.permute.xlu0 %617
        %v620 = vmul.f32 %v490, %v618
        %v621 = vmul.f32 %v491, %v618
        %624 = vrot.lane.b32.xlu0 %v620, 112
        %v625 = vpop.permute.xlu0 %624
        %626 = vrot.lane.b32.xlu0 %v621, 112
        %v627 = vpop.permute.xlu0 %626
        %v630 = vadd.f32 %v590, %v625
        %v631 = vadd.f32 %v591, %v627
        %v632 = vlaneseq
        %v633 = vshrl.u32 %v632, 7
        %v634 = vsub.s32 3, %v633
        %v635 = vrot.slane %v349, %v634
        %637 = vrot.lane.b32.xlu0 %v635, 16
        %v638 = vpop.permute.xlu0 %637
        %v640 = vmul.f32 %v490, %v638
        %v641 = vmul.f32 %v491, %v638
        %644 = vrot.lane.b32.xlu0 %v640, 116
        %v645 = vpop.permute.xlu0 %644
        %646 = vrot.lane.b32.xlu0 %v641, 116
        %v647 = vpop.permute.xlu0 %646
        %v650 = vadd.f32 %v610, %v645
        %v651 = vadd.f32 %v611, %v647
        %v652 = vlaneseq
        %v653 = vshrl.u32 %v652, 7
        %v654 = vsub.s32 4, %v653
        %v655 = vrot.slane %v354, %v654
        %657 = vrot.lane.b32.xlu0 %v655, 20
        %v658 = vpop.permute.xlu0 %657
        %v660 = vmul.f32 %v490, %v658
        %v661 = vmul.f32 %v491, %v658
        %664 = vrot.lane.b32.xlu0 %v660, 108
        %v665 = vpop.permute.xlu0 %664
        %666 = vrot.lane.b32.xlu0 %v661, 108
        %v667 = vpop.permute.xlu0 %666
        %v670 = vadd.f32 %v630, %v665
        %v671 = vadd.f32 %v631, %v667
        %v672 = vlaneseq
        %v673 = vshrl.u32 %v672, 7
        %v674 = vsub.s32 4, %v673
        %v675 = vrot.slane %v349, %v674
        %677 = vrot.lane.b32.xlu0 %v675, 20
        %v678 = vpop.permute.xlu0 %677
        %v680 = vmul.f32 %v490, %v678
        %v681 = vmul.f32 %v491, %v678
        %684 = vrot.lane.b32.xlu0 %v680, 112
        %v685 = vpop.permute.xlu0 %684
        %686 = vrot.lane.b32.xlu0 %v681, 112
        %v687 = vpop.permute.xlu0 %686
        %v690 = vadd.f32 %v650, %v685
        %v691 = vadd.f32 %v651, %v687
        %v692 = vlaneseq
        %v693 = vshrl.u32 %v692, 7
        %v694 = vsub.s32 5, %v693
        %v695 = vrot.slane %v354, %v694
        %697 = vrot.lane.b32.xlu0 %v695, 24
        %v698 = vpop.permute.xlu0 %697
        %v700 = vmul.f32 %v490, %v698
        %v701 = vmul.f32 %v491, %v698
        %704 = vrot.lane.b32.xlu0 %v700, 104
        %v705 = vpop.permute.xlu0 %704
        %706 = vrot.lane.b32.xlu0 %v701, 104
        %v707 = vpop.permute.xlu0 %706
        %v710 = vadd.f32 %v670, %v705
        %v711 = vadd.f32 %v671, %v707
        %v712 = vld [vmem:[%s345 + $0x2] sm:$0xff]
        %v713 = vld [vmem:[%s345 + $0xa] sm:$0xff]
        %v714 = vlaneseq
        %v715 = vshrl.u32 %v714, 7
        %v716 = vsub.s32 6, %v715
        %v717 = vrot.slane %v354, %v716
        %v718 = vmul.f32 %v712, %v717
        %v719 = vmul.f32 %v713, %v717
        %v720 = vadd.f32 %v710, %v718
        %v721 = vadd.f32 %v711, %v719
        %v722 = vlaneseq
        %v723 = vshrl.u32 %v722, 7
        %v724 = vsub.s32 7, %v723
        %v725 = vrot.slane %v354, %v724
        %727 = vrot.lane.b32.xlu0 %v725, 4
        %v728 = vpop.permute.xlu0 %727
        %v730 = vmul.f32 %v712, %v728
        %v731 = vmul.f32 %v713, %v728
        %734 = vrot.lane.b32.xlu0 %v730, 124
        %v735 = vpop.permute.xlu0 %734
        %736 = vrot.lane.b32.xlu0 %v731, 124
        %v737 = vpop.permute.xlu0 %736
        %v740 = vadd.f32 %v720, %v735
        %v741 = vadd.f32 %v721, %v737
        %v742 = vlaneseq
        %v743 = vshrl.u32 %v742, 7
        %v744 = vsub.s32 5, %v743
        %v745 = vrot.slane %v349, %v744
        %747 = vrot.lane.b32.xlu0 %v745, 4
        %v748 = vpop.permute.xlu0 %747
        %v750 = vmul.f32 %v712, %v748
        %v751 = vmul.f32 %v713, %v748
        %v752 = vadd.f32 %v690, %v750
        %v753 = vadd.f32 %v691, %v751
        %v754 = vlaneseq
        %v755 = vshrl.u32 %v754, 7
        %v756 = vsub.s32 0, %v755
        %v757 = vrot.slane %v355, %v756
        %759 = vrot.lane.b32.xlu0 %v757, 8
        %v760 = vpop.permute.xlu0 %759
        %v762 = vmul.f32 %v712, %v760
        %v763 = vmul.f32 %v713, %v760
        %766 = vrot.lane.b32.xlu0 %v762, 120
        %v767 = vpop.permute.xlu0 %766
        %768 = vrot.lane.b32.xlu0 %v763, 120
        %v769 = vpop.permute.xlu0 %768
        %v772 = vadd.f32 %v740, %v767
        %v773 = vadd.f32 %v741, %v769
        %v774 = vlaneseq
        %v775 = vshrl.u32 %v774, 7
        %v776 = vsub.s32 6, %v775
        %v777 = vrot.slane %v349, %v776
        %779 = vrot.lane.b32.xlu0 %v777, 8
        %v780 = vpop.permute.xlu0 %779
        %v782 = vmul.f32 %v712, %v780
        %v783 = vmul.f32 %v713, %v780
        %786 = vrot.lane.b32.xlu0 %v782, 124
        %v787 = vpop.permute.xlu0 %786
        %788 = vrot.lane.b32.xlu0 %v783, 124
        %v789 = vpop.permute.xlu0 %788
        %v792 = vadd.f32 %v752, %v787
        %v793 = vadd.f32 %v753, %v789
        %v794 = vlaneseq
        %v795 = vshrl.u32 %v794, 7
        %v796 = vsub.s32 0, %v795
        %v797 = vrot.slane %v347, %v796
        %799 = vrot.lane.b32.xlu0 %v797, 8
        %v800 = vpop.permute.xlu0 %799
        %v802 = vmul.f32 %v712, %v800
        %v803 = vmul.f32 %v713, %v800
        %v804 = vadd.f32 %v802, 0.0
        %v805 = vadd.f32 %v803, 0.0
        %v806 = vlaneseq
        %v807 = vshrl.u32 %v806, 7
        %v808 = vsub.s32 1, %v807
        %v809 = vrot.slane %v355, %v808
        %811 = vrot.lane.b32.xlu0 %v809, 12
        %v812 = vpop.permute.xlu0 %811
        %v814 = vmul.f32 %v712, %v812
        %v815 = vmul.f32 %v713, %v812
        %818 = vrot.lane.b32.xlu0 %v814, 116
        %v819 = vpop.permute.xlu0 %818
        %820 = vrot.lane.b32.xlu0 %v815, 116
        %v821 = vpop.permute.xlu0 %820
        %v824 = vadd.f32 %v772, %v819
        %v825 = vadd.f32 %v773, %v821
        %v826 = vlaneseq
        %v827 = vshrl.u32 %v826, 7
        %v828 = vsub.s32 7, %v827
        %v829 = vrot.slane %v349, %v828
        %831 = vrot.lane.b32.xlu0 %v829, 12
        %v832 = vpop.permute.xlu0 %831
        %v834 = vmul.f32 %v712, %v832
        %v835 = vmul.f32 %v713, %v832
        %838 = vrot.lane.b32.xlu0 %v834, 120
        %v839 = vpop.permute.xlu0 %838
        %840 = vrot.lane.b32.xlu0 %v835, 120
        %v841 = vpop.permute.xlu0 %840
        %v844 = vadd.f32 %v792, %v839
        %v845 = vadd.f32 %v793, %v841
        %v846 = vlaneseq
        %v847 = vshrl.u32 %v846, 7
        %v848 = vsub.s32 1, %v847
        %v849 = vrot.slane %v347, %v848
        %851 = vrot.lane.b32.xlu0 %v849, 12
        %v852 = vpop.permute.xlu0 %851
        %v854 = vmul.f32 %v712, %v852
        %v855 = vmul.f32 %v713, %v852
        %858 = vrot.lane.b32.xlu0 %v854, 124
        %v859 = vpop.permute.xlu0 %858
        %860 = vrot.lane.b32.xlu0 %v855, 124
        %v861 = vpop.permute.xlu0 %860
        %v864 = vadd.f32 %v804, %v859
        %v865 = vadd.f32 %v805, %v861
        %v866 = vlaneseq
        %v867 = vshrl.u32 %v866, 7
        %v868 = vsub.s32 2, %v867
        %v869 = vrot.slane %v355, %v868
        %871 = vrot.lane.b32.xlu0 %v869, 16
        %v872 = vpop.permute.xlu0 %871
        %v874 = vmul.f32 %v712, %v872
        %v875 = vmul.f32 %v713, %v872
        %878 = vrot.lane.b32.xlu0 %v874, 112
        %v879 = vpop.permute.xlu0 %878
        %880 = vrot.lane.b32.xlu0 %v875, 112
        %v881 = vpop.permute.xlu0 %880
        %v884 = vadd.f32 %v824, %v879
        %v885 = vadd.f32 %v825, %v881
        %v886 = vlaneseq
        %v887 = vshrl.u32 %v886, 7
        %v888 = vsub.s32 0, %v887
        %v889 = vrot.slane %v350, %v888
        %891 = vrot.lane.b32.xlu0 %v889, 16
        %v892 = vpop.permute.xlu0 %891
        %v894 = vmul.f32 %v712, %v892
        %v895 = vmul.f32 %v713, %v892
        %898 = vrot.lane.b32.xlu0 %v894, 116
        %v899 = vpop.permute.xlu0 %898
        %900 = vrot.lane.b32.xlu0 %v895, 116
        %v901 = vpop.permute.xlu0 %900
        %v904 = vadd.f32 %v844, %v899
        %v905 = vadd.f32 %v845, %v901
        %v906 = vlaneseq
        %v907 = vshrl.u32 %v906, 7
        %v908 = vsub.s32 2, %v907
        %v909 = vrot.slane %v347, %v908
        %911 = vrot.lane.b32.xlu0 %v909, 16
        %v912 = vpop.permute.xlu0 %911
        %v914 = vmul.f32 %v712, %v912
        %v915 = vmul.f32 %v713, %v912
        %918 = vrot.lane.b32.xlu0 %v914, 120
        %v919 = vpop.permute.xlu0 %918
        %920 = vrot.lane.b32.xlu0 %v915, 120
        %v921 = vpop.permute.xlu0 %920
        %v924 = vadd.f32 %v864, %v919
        %v925 = vadd.f32 %v865, %v921
        %v926 = vlaneseq
        %v927 = vshrl.u32 %v926, 7
        %v928 = vsub.s32 3, %v927
        %v929 = vrot.slane %v355, %v928
        %931 = vrot.lane.b32.xlu0 %v929, 20
        %v932 = vpop.permute.xlu0 %931
        %v934 = vmul.f32 %v712, %v932
        %v935 = vmul.f32 %v713, %v932
        %938 = vrot.lane.b32.xlu0 %v934, 108
        %v939 = vpop.permute.xlu0 %938
        %940 = vrot.lane.b32.xlu0 %v935, 108
        %v941 = vpop.permute.xlu0 %940
        %v944 = vadd.f32 %v884, %v939
        %v945 = vadd.f32 %v885, %v941
        %v946 = vlaneseq
        %v947 = vshrl.u32 %v946, 7
        %v948 = vsub.s32 1, %v947
        %v949 = vrot.slane %v350, %v948
        %951 = vrot.lane.b32.xlu0 %v949, 20
        %v952 = vpop.permute.xlu0 %951
        %v954 = vmul.f32 %v712, %v952
        %v955 = vmul.f32 %v713, %v952
        %958 = vrot.lane.b32.xlu0 %v954, 112
        %v959 = vpop.permute.xlu0 %958
        %960 = vrot.lane.b32.xlu0 %v955, 112
        %v961 = vpop.permute.xlu0 %960
        %v964 = vadd.f32 %v904, %v959
        %v965 = vadd.f32 %v905, %v961
        %v966 = vlaneseq
        %v967 = vshrl.u32 %v966, 7
        %v968 = vsub.s32 4, %v967
        %v969 = vrot.slane %v355, %v968
        %971 = vrot.lane.b32.xlu0 %v969, 24
        %v972 = vpop.permute.xlu0 %971
        %v974 = vmul.f32 %v712, %v972
        %v975 = vmul.f32 %v713, %v972
        %978 = vrot.lane.b32.xlu0 %v974, 104
        %v979 = vpop.permute.xlu0 %978
        %980 = vrot.lane.b32.xlu0 %v975, 104
        %v981 = vpop.permute.xlu0 %980
        %v984 = vadd.f32 %v944, %v979
        %v985 = vadd.f32 %v945, %v981
        %v986 = vld [vmem:[%s345 + $0x3] sm:$0xff]
        %v987 = vld [vmem:[%s345 + $0xb] sm:$0xff]
        %v988 = vlaneseq
        %v989 = vshrl.u32 %v988, 7
        %v990 = vsub.s32 5, %v989
        %v991 = vrot.slane %v355, %v990
        %v992 = vmul.f32 %v986, %v991
        %v993 = vmul.f32 %v987, %v991
        %v994 = vadd.f32 %v984, %v992
        %v995 = vadd.f32 %v985, %v993
        %v996 = vlaneseq
        %v997 = vshrl.u32 %v996, 7
        %v998 = vsub.s32 6, %v997
        %v999 = vrot.slane %v355, %v998
        %1001 = vrot.lane.b32.xlu0 %v999, 4
        %v1002 = vpop.permute.xlu0 %1001
        %v1004 = vmul.f32 %v986, %v1002
        %v1005 = vmul.f32 %v987, %v1002
        %1008 = vrot.lane.b32.xlu0 %v1004, 124
        %v1009 = vpop.permute.xlu0 %1008
        %1010 = vrot.lane.b32.xlu0 %v1005, 124
        %v1011 = vpop.permute.xlu0 %1010
        %v1014 = vadd.f32 %v994, %v1009
        %v1015 = vadd.f32 %v995, %v1011
        %v1016 = vlaneseq
        %v1017 = vshrl.u32 %v1016, 7
        %v1018 = vsub.s32 2, %v1017
        %v1019 = vrot.slane %v350, %v1018
        %1021 = vrot.lane.b32.xlu0 %v1019, 4
        %v1022 = vpop.permute.xlu0 %1021
        %v1024 = vmul.f32 %v986, %v1022
        %v1025 = vmul.f32 %v987, %v1022
        %v1026 = vadd.f32 %v964, %v1024
        %v1027 = vadd.f32 %v965, %v1025
        %v1028 = vlaneseq
        %v1029 = vshrl.u32 %v1028, 7
        %v1030 = vsub.s32 7, %v1029
        %v1031 = vrot.slane %v355, %v1030
        %1033 = vrot.lane.b32.xlu0 %v1031, 8
        %v1034 = vpop.permute.xlu0 %1033
        %v1036 = vmul.f32 %v986, %v1034
        %v1037 = vmul.f32 %v987, %v1034
        %1040 = vrot.lane.b32.xlu0 %v1036, 120
        %v1041 = vpop.permute.xlu0 %1040
        %1042 = vrot.lane.b32.xlu0 %v1037, 120
        %v1043 = vpop.permute.xlu0 %1042
        %v1046 = vadd.f32 %v1014, %v1041
        %v1047 = vadd.f32 %v1015, %v1043
        %v1048 = vlaneseq
        %v1049 = vshrl.u32 %v1048, 7
        %v1050 = vsub.s32 3, %v1049
        %v1051 = vrot.slane %v350, %v1050
        %1053 = vrot.lane.b32.xlu0 %v1051, 8
        %v1054 = vpop.permute.xlu0 %1053
        %v1056 = vmul.f32 %v986, %v1054
        %v1057 = vmul.f32 %v987, %v1054
        %1060 = vrot.lane.b32.xlu0 %v1056, 124
        %v1061 = vpop.permute.xlu0 %1060
        %1062 = vrot.lane.b32.xlu0 %v1057, 124
        %v1063 = vpop.permute.xlu0 %1062
        %v1066 = vadd.f32 %v1026, %v1061
        %v1067 = vadd.f32 %v1027, %v1063
        %v1068 = vlaneseq
        %v1069 = vshrl.u32 %v1068, 7
        %v1070 = vsub.s32 3, %v1069
        %v1071 = vrot.slane %v347, %v1070
        %1073 = vrot.lane.b32.xlu0 %v1071, 8
        %v1074 = vpop.permute.xlu0 %1073
        %v1076 = vmul.f32 %v986, %v1074
        %v1077 = vmul.f32 %v987, %v1074
        %v1078 = vadd.f32 %v924, %v1076
        %v1079 = vadd.f32 %v925, %v1077
        %v1080 = vlaneseq
        %v1081 = vshrl.u32 %v1080, 7
        %v1082 = vsub.s32 0, %v1081
        %v1083 = vrot.slane %v356, %v1082
        %1085 = vrot.lane.b32.xlu0 %v1083, 12
        %v1086 = vpop.permute.xlu0 %1085
        %v1088 = vmul.f32 %v986, %v1086
        %v1089 = vmul.f32 %v987, %v1086
        %1092 = vrot.lane.b32.xlu0 %v1088, 116
        %v1093 = vpop.permute.xlu0 %1092
        %1094 = vrot.lane.b32.xlu0 %v1089, 116
        %v1095 = vpop.permute.xlu0 %1094
        %v1098 = vadd.f32 %v1046, %v1093
        %v1099 = vadd.f32 %v1047, %v1095
        %v1100 = vlaneseq
        %v1101 = vshrl.u32 %v1100, 7
        %v1102 = vsub.s32 4, %v1101
        %v1103 = vrot.slane %v350, %v1102
        %1105 = vrot.lane.b32.xlu0 %v1103, 12
        %v1106 = vpop.permute.xlu0 %1105
        %v1108 = vmul.f32 %v986, %v1106
        %v1109 = vmul.f32 %v987, %v1106
        %1112 = vrot.lane.b32.xlu0 %v1108, 120
        %v1113 = vpop.permute.xlu0 %1112
        %1114 = vrot.lane.b32.xlu0 %v1109, 120
        %v1115 = vpop.permute.xlu0 %1114
        %v1118 = vadd.f32 %v1066, %v1113
        %v1119 = vadd.f32 %v1067, %v1115
        %v1120 = vlaneseq
        %v1121 = vshrl.u32 %v1120, 7
        %v1122 = vsub.s32 4, %v1121
        %v1123 = vrot.slane %v347, %v1122
        %1125 = vrot.lane.b32.xlu0 %v1123, 12
        %v1126 = vpop.permute.xlu0 %1125
        %v1128 = vmul.f32 %v986, %v1126
        %v1129 = vmul.f32 %v987, %v1126
        %1132 = vrot.lane.b32.xlu0 %v1128, 124
        %v1133 = vpop.permute.xlu0 %1132
        %1134 = vrot.lane.b32.xlu0 %v1129, 124
        %v1135 = vpop.permute.xlu0 %1134
        %v1138 = vadd.f32 %v1078, %v1133
        %v1139 = vadd.f32 %v1079, %v1135
        %v1140 = vlaneseq
        %v1141 = vshrl.u32 %v1140, 7
        %v1142 = vsub.s32 1, %v1141
        %v1143 = vrot.slane %v356, %v1142
        %1145 = vrot.lane.b32.xlu0 %v1143, 16
        %v1146 = vpop.permute.xlu0 %1145
        %v1148 = vmul.f32 %v986, %v1146
        %v1149 = vmul.f32 %v987, %v1146
        %1152 = vrot.lane.b32.xlu0 %v1148, 112
        %v1153 = vpop.permute.xlu0 %1152
        %1154 = vrot.lane.b32.xlu0 %v1149, 112
        %v1155 = vpop.permute.xlu0 %1154
        %v1158 = vadd.f32 %v1098, %v1153
        %v1159 = vadd.f32 %v1099, %v1155
        %v1160 = vlaneseq
        %v1161 = vshrl.u32 %v1160, 7
        %v1162 = vsub.s32 5, %v1161
        %v1163 = vrot.slane %v350, %v1162
        %1165 = vrot.lane.b32.xlu0 %v1163, 16
        %v1166 = vpop.permute.xlu0 %1165
        %v1168 = vmul.f32 %v986, %v1166
        %v1169 = vmul.f32 %v987, %v1166
        %1172 = vrot.lane.b32.xlu0 %v1168, 116
        %v1173 = vpop.permute.xlu0 %1172
        %1174 = vrot.lane.b32.xlu0 %v1169, 116
        %v1175 = vpop.permute.xlu0 %1174
        %v1178 = vadd.f32 %v1118, %v1173
        %v1179 = vadd.f32 %v1119, %v1175
        %v1180 = vlaneseq
        %v1181 = vshrl.u32 %v1180, 7
        %v1182 = vsub.s32 5, %v1181
        %v1183 = vrot.slane %v347, %v1182
        %1185 = vrot.lane.b32.xlu0 %v1183, 16
        %v1186 = vpop.permute.xlu0 %1185
        %v1188 = vmul.f32 %v986, %v1186
        %v1189 = vmul.f32 %v987, %v1186
        %1192 = vrot.lane.b32.xlu0 %v1188, 120
        %v1193 = vpop.permute.xlu0 %1192
        %1194 = vrot.lane.b32.xlu0 %v1189, 120
        %v1195 = vpop.permute.xlu0 %1194
        %v1198 = vadd.f32 %v1138, %v1193
        %v1199 = vadd.f32 %v1139, %v1195
        %v1200 = vlaneseq
        %v1201 = vshrl.u32 %v1200, 7
        %v1202 = vsub.s32 2, %v1201
        %v1203 = vrot.slane %v356, %v1202
        %1205 = vrot.lane.b32.xlu0 %v1203, 20
        %v1206 = vpop.permute.xlu0 %1205
        %v1208 = vmul.f32 %v986, %v1206
        %v1209 = vmul.f32 %v987, %v1206
        %1212 = vrot.lane.b32.xlu0 %v1208, 108
        %v1213 = vpop.permute.xlu0 %1212
        %1214 = vrot.lane.b32.xlu0 %v1209, 108
        %v1215 = vpop.permute.xlu0 %1214
        %v1218 = vadd.f32 %v1158, %v1213
        %v1219 = vadd.f32 %v1159, %v1215
        %v1220 = vlaneseq
        %v1221 = vshrl.u32 %v1220, 7
        %v1222 = vsub.s32 6, %v1221
        %v1223 = vrot.slane %v350, %v1222
        %1225 = vrot.lane.b32.xlu0 %v1223, 20
        %v1226 = vpop.permute.xlu0 %1225
        %v1228 = vmul.f32 %v986, %v1226
        %v1229 = vmul.f32 %v987, %v1226
        %1232 = vrot.lane.b32.xlu0 %v1228, 112
        %v1233 = vpop.permute.xlu0 %1232
        %1234 = vrot.lane.b32.xlu0 %v1229, 112
        %v1235 = vpop.permute.xlu0 %1234
        %v1238 = vadd.f32 %v1178, %v1233
        %v1239 = vadd.f32 %v1179, %v1235
        %v1240 = vlaneseq
        %v1241 = vshrl.u32 %v1240, 7
        %v1242 = vsub.s32 3, %v1241
        %v1243 = vrot.slane %v356, %v1242
        %1245 = vrot.lane.b32.xlu0 %v1243, 24
        %v1246 = vpop.permute.xlu0 %1245
        %v1248 = vmul.f32 %v986, %v1246
        %v1249 = vmul.f32 %v987, %v1246
        %1252 = vrot.lane.b32.xlu0 %v1248, 104
        %v1253 = vpop.permute.xlu0 %1252
        %1254 = vrot.lane.b32.xlu0 %v1249, 104
        %v1255 = vpop.permute.xlu0 %1254
        %v1258 = vadd.f32 %v1218, %v1253
        %v1259 = vadd.f32 %v1219, %v1255
        %v1260 = vld [vmem:[%s345 + $0x4] sm:$0xff]
        %v1261 = vld [vmem:[%s345 + $0xc] sm:$0xff]
        %v1262 = vlaneseq
        %v1263 = vshrl.u32 %v1262, 7
        %v1264 = vsub.s32 4, %v1263
        %v1265 = vrot.slane %v356, %v1264
        %v1266 = vmul.f32 %v1260, %v1265
        %v1267 = vmul.f32 %v1261, %v1265
        %v1268 = vadd.f32 %v1258, %v1266
        %v1269 = vadd.f32 %v1259, %v1267
        %v1270 = vlaneseq
        %v1271 = vshrl.u32 %v1270, 7
        %v1272 = vsub.s32 5, %v1271
        %v1273 = vrot.slane %v356, %v1272
        %1275 = vrot.lane.b32.xlu0 %v1273, 4
        %v1276 = vpop.permute.xlu0 %1275
        %v1278 = vmul.f32 %v1260, %v1276
        %v1279 = vmul.f32 %v1261, %v1276
        %1282 = vrot.lane.b32.xlu0 %v1278, 124
        %v1283 = vpop.permute.xlu0 %1282
        %1284 = vrot.lane.b32.xlu0 %v1279, 124
        %v1285 = vpop.permute.xlu0 %1284
        %v1288 = vadd.f32 %v1268, %v1283
        %v1289 = vadd.f32 %v1269, %v1285
        %v1290 = vlaneseq
        %v1291 = vshrl.u32 %v1290, 7
        %v1292 = vsub.s32 7, %v1291
        %v1293 = vrot.slane %v350, %v1292
        %1295 = vrot.lane.b32.xlu0 %v1293, 4
        %v1296 = vpop.permute.xlu0 %1295
        %v1298 = vmul.f32 %v1260, %v1296
        %v1299 = vmul.f32 %v1261, %v1296
        %v1300 = vadd.f32 %v1238, %v1298
        %v1301 = vadd.f32 %v1239, %v1299
        %v1302 = vlaneseq
        %v1303 = vshrl.u32 %v1302, 7
        %v1304 = vsub.s32 6, %v1303
        %v1305 = vrot.slane %v356, %v1304
        %1307 = vrot.lane.b32.xlu0 %v1305, 8
        %v1308 = vpop.permute.xlu0 %1307
        %v1310 = vmul.f32 %v1260, %v1308
        %v1311 = vmul.f32 %v1261, %v1308
        %1314 = vrot.lane.b32.xlu0 %v1310, 120
        %v1315 = vpop.permute.xlu0 %1314
        %1316 = vrot.lane.b32.xlu0 %v1311, 120
        %v1317 = vpop.permute.xlu0 %1316
        %v1320 = vadd.f32 %v1288, %v1315
        %v1321 = vadd.f32 %v1289, %v1317
        %v1322 = vlaneseq
        %v1323 = vshrl.u32 %v1322, 7
        %v1324 = vsub.s32 0, %v1323
        %v1325 = vrot.slane %v351, %v1324
        %1327 = vrot.lane.b32.xlu0 %v1325, 8
        %v1328 = vpop.permute.xlu0 %1327
        %v1330 = vmul.f32 %v1260, %v1328
        %v1331 = vmul.f32 %v1261, %v1328
        %1334 = vrot.lane.b32.xlu0 %v1330, 124
        %v1335 = vpop.permute.xlu0 %1334
        %1336 = vrot.lane.b32.xlu0 %v1331, 124
        %v1337 = vpop.permute.xlu0 %1336
        %v1340 = vadd.f32 %v1300, %v1335
        %v1341 = vadd.f32 %v1301, %v1337
        %v1342 = vlaneseq
        %v1343 = vshrl.u32 %v1342, 7
        %v1344 = vsub.s32 6, %v1343
        %v1345 = vrot.slane %v347, %v1344
        %1347 = vrot.lane.b32.xlu0 %v1345, 8
        %v1348 = vpop.permute.xlu0 %1347
        %v1350 = vmul.f32 %v1260, %v1348
        %v1351 = vmul.f32 %v1261, %v1348
        %v1352 = vadd.f32 %v1198, %v1350
        %v1353 = vadd.f32 %v1199, %v1351
        %v1354 = vlaneseq
        %v1355 = vshrl.u32 %v1354, 7
        %v1356 = vsub.s32 7, %v1355
        %v1357 = vrot.slane %v356, %v1356
        %1359 = vrot.lane.b32.xlu0 %v1357, 12
        %v1360 = vpop.permute.xlu0 %1359
        %v1362 = vmul.f32 %v1260, %v1360
        %v1363 = vmul.f32 %v1261, %v1360
        %1366 = vrot.lane.b32.xlu0 %v1362, 116
        %v1367 = vpop.permute.xlu0 %1366
        %1368 = vrot.lane.b32.xlu0 %v1363, 116
        %v1369 = vpop.permute.xlu0 %1368
        %v1372 = vadd.f32 %v1320, %v1367
        %v1373 = vadd.f32 %v1321, %v1369
        %v1374 = vlaneseq
        %v1375 = vshrl.u32 %v1374, 7
        %v1376 = vsub.s32 1, %v1375
        %v1377 = vrot.slane %v351, %v1376
        %1379 = vrot.lane.b32.xlu0 %v1377, 12
        %v1380 = vpop.permute.xlu0 %1379
        %v1382 = vmul.f32 %v1260, %v1380
        %v1383 = vmul.f32 %v1261, %v1380
        %1386 = vrot.lane.b32.xlu0 %v1382, 120
        %v1387 = vpop.permute.xlu0 %1386
        %1388 = vrot.lane.b32.xlu0 %v1383, 120
        %v1389 = vpop.permute.xlu0 %1388
        %v1392 = vadd.f32 %v1340, %v1387
        %v1393 = vadd.f32 %v1341, %v1389
        %v1394 = vlaneseq
        %v1395 = vshrl.u32 %v1394, 7
        %v1396 = vsub.s32 7, %v1395
        %v1397 = vrot.slane %v347, %v1396
        %1399 = vrot.lane.b32.xlu0 %v1397, 12
        %v1400 = vpop.permute.xlu0 %1399
        %v1402 = vmul.f32 %v1260, %v1400
        %v1403 = vmul.f32 %v1261, %v1400
        %1406 = vrot.lane.b32.xlu0 %v1402, 124
        %v1407 = vpop.permute.xlu0 %1406
        %1408 = vrot.lane.b32.xlu0 %v1403, 124
        %v1409 = vpop.permute.xlu0 %1408
        %v1412 = vadd.f32 %v1352, %v1407
        %v1413 = vadd.f32 %v1353, %v1409
        %v1414 = vlaneseq
        %v1415 = vshrl.u32 %v1414, 7
        %v1416 = vsub.s32 0, %v1415
        %v1417 = vrot.slane %v357, %v1416
        %1419 = vrot.lane.b32.xlu0 %v1417, 16
        %v1420 = vpop.permute.xlu0 %1419
        %v1422 = vmul.f32 %v1260, %v1420
        %v1423 = vmul.f32 %v1261, %v1420
        %1426 = vrot.lane.b32.xlu0 %v1422, 112
        %v1427 = vpop.permute.xlu0 %1426
        %1428 = vrot.lane.b32.xlu0 %v1423, 112
        %v1429 = vpop.permute.xlu0 %1428
        %v1432 = vadd.f32 %v1372, %v1427
        %v1433 = vadd.f32 %v1373, %v1429
        %v1434 = vlaneseq
        %v1435 = vshrl.u32 %v1434, 7
        %v1436 = vsub.s32 2, %v1435
        %v1437 = vrot.slane %v351, %v1436
        %1439 = vrot.lane.b32.xlu0 %v1437, 16
        %v1440 = vpop.permute.xlu0 %1439
        %v1442 = vmul.f32 %v1260, %v1440
        %v1443 = vmul.f32 %v1261, %v1440
        %1446 = vrot.lane.b32.xlu0 %v1442, 116
        %v1447 = vpop.permute.xlu0 %1446
        %1448 = vrot.lane.b32.xlu0 %v1443, 116
        %v1449 = vpop.permute.xlu0 %1448
        %v1452 = vadd.f32 %v1392, %v1447
        %v1453 = vadd.f32 %v1393, %v1449
        %v1454 = vlaneseq
        %v1455 = vshrl.u32 %v1454, 7
        %v1456 = vsub.s32 0, %v1455
        %v1457 = vrot.slane %v348, %v1456
        %1459 = vrot.lane.b32.xlu0 %v1457, 16
        %v1460 = vpop.permute.xlu0 %1459
        %v1462 = vmul.f32 %v1260, %v1460
        %v1463 = vmul.f32 %v1261, %v1460
        %1466 = vrot.lane.b32.xlu0 %v1462, 120
        %v1467 = vpop.permute.xlu0 %1466
        %1468 = vrot.lane.b32.xlu0 %v1463, 120
        %v1469 = vpop.permute.xlu0 %1468
        %v1472 = vadd.f32 %v1412, %v1467
        %v1473 = vadd.f32 %v1413, %v1469
        %v1474 = vlaneseq
        %v1475 = vshrl.u32 %v1474, 7
        %v1476 = vsub.s32 1, %v1475
        %v1477 = vrot.slane %v357, %v1476
        %1479 = vrot.lane.b32.xlu0 %v1477, 20
        %v1480 = vpop.permute.xlu0 %1479
        %v1482 = vmul.f32 %v1260, %v1480
        %v1483 = vmul.f32 %v1261, %v1480
        %1486 = vrot.lane.b32.xlu0 %v1482, 108
        %v1487 = vpop.permute.xlu0 %1486
        %1488 = vrot.lane.b32.xlu0 %v1483, 108
        %v1489 = vpop.permute.xlu0 %1488
        %v1492 = vadd.f32 %v1432, %v1487
        %v1493 = vadd.f32 %v1433, %v1489
        %v1494 = vlaneseq
        %v1495 = vshrl.u32 %v1494, 7
        %v1496 = vsub.s32 3, %v1495
        %v1497 = vrot.slane %v351, %v1496
        %1499 = vrot.lane.b32.xlu0 %v1497, 20
        %v1500 = vpop.permute.xlu0 %1499
        %v1502 = vmul.f32 %v1260, %v1500
        %v1503 = vmul.f32 %v1261, %v1500
        %1506 = vrot.lane.b32.xlu0 %v1502, 112
        %v1507 = vpop.permute.xlu0 %1506
        %1508 = vrot.lane.b32.xlu0 %v1503, 112
        %v1509 = vpop.permute.xlu0 %1508
        %v1512 = vadd.f32 %v1452, %v1507
        %v1513 = vadd.f32 %v1453, %v1509
        %v1514 = vlaneseq
        %v1515 = vshrl.u32 %v1514, 7
        %v1516 = vsub.s32 2, %v1515
        %v1517 = vrot.slane %v357, %v1516
        %1519 = vrot.lane.b32.xlu0 %v1517, 24
        %v1520 = vpop.permute.xlu0 %1519
        %v1522 = vmul.f32 %v1260, %v1520
        %v1523 = vmul.f32 %v1261, %v1520
        %1526 = vrot.lane.b32.xlu0 %v1522, 104
        %v1527 = vpop.permute.xlu0 %1526
        %1528 = vrot.lane.b32.xlu0 %v1523, 104
        %v1529 = vpop.permute.xlu0 %1528
        %v1532 = vadd.f32 %v1492, %v1527
        %v1533 = vadd.f32 %v1493, %v1529
        %v1534 = vld [vmem:[%s345 + $0x5] sm:$0xff]
        %v1535 = vld [vmem:[%s345 + $0xd] sm:$0xff]
        %v1536 = vlaneseq
        %v1537 = vshrl.u32 %v1536, 7
        %v1538 = vsub.s32 3, %v1537
        %v1539 = vrot.slane %v357, %v1538
        %v1540 = vmul.f32 %v1534, %v1539
        %v1541 = vmul.f32 %v1535, %v1539
        %v1542 = vadd.f32 %v1532, %v1540
        %v1543 = vadd.f32 %v1533, %v1541
        %v1544 = vlaneseq
        %v1545 = vshrl.u32 %v1544, 7
        %v1546 = vsub.s32 4, %v1545
        %v1547 = vrot.slane %v357, %v1546
        %1549 = vrot.lane.b32.xlu0 %v1547, 4
        %v1550 = vpop.permute.xlu0 %1549
        %v1552 = vmul.f32 %v1534, %v1550
        %v1553 = vmul.f32 %v1535, %v1550
        %1556 = vrot.lane.b32.xlu0 %v1552, 124
        %v1557 = vpop.permute.xlu0 %1556
        %1558 = vrot.lane.b32.xlu0 %v1553, 124
        %v1559 = vpop.permute.xlu0 %1558
        %v1562 = vadd.f32 %v1542, %v1557
        %v1563 = vadd.f32 %v1543, %v1559
        %v1564 = vlaneseq
        %v1565 = vshrl.u32 %v1564, 7
        %v1566 = vsub.s32 4, %v1565
        %v1567 = vrot.slane %v351, %v1566
        %1569 = vrot.lane.b32.xlu0 %v1567, 4
        %v1570 = vpop.permute.xlu0 %1569
        %v1572 = vmul.f32 %v1534, %v1570
        %v1573 = vmul.f32 %v1535, %v1570
        %v1574 = vadd.f32 %v1512, %v1572
        %v1575 = vadd.f32 %v1513, %v1573
        %v1576 = vlaneseq
        %v1577 = vshrl.u32 %v1576, 7
        %v1578 = vsub.s32 5, %v1577
        %v1579 = vrot.slane %v357, %v1578
        %1581 = vrot.lane.b32.xlu0 %v1579, 8
        %v1582 = vpop.permute.xlu0 %1581
        %v1584 = vmul.f32 %v1534, %v1582
        %v1585 = vmul.f32 %v1535, %v1582
        %1588 = vrot.lane.b32.xlu0 %v1584, 120
        %v1589 = vpop.permute.xlu0 %1588
        %1590 = vrot.lane.b32.xlu0 %v1585, 120
        %v1591 = vpop.permute.xlu0 %1590
        %v1594 = vadd.f32 %v1562, %v1589
        %v1595 = vadd.f32 %v1563, %v1591
        %v1596 = vlaneseq
        %v1597 = vshrl.u32 %v1596, 7
        %v1598 = vsub.s32 5, %v1597
        %v1599 = vrot.slane %v351, %v1598
        %1601 = vrot.lane.b32.xlu0 %v1599, 8
        %v1602 = vpop.permute.xlu0 %1601
        %v1604 = vmul.f32 %v1534, %v1602
        %v1605 = vmul.f32 %v1535, %v1602
        %1608 = vrot.lane.b32.xlu0 %v1604, 124
        %v1609 = vpop.permute.xlu0 %1608
        %1610 = vrot.lane.b32.xlu0 %v1605, 124
        %v1611 = vpop.permute.xlu0 %1610
        %v1614 = vadd.f32 %v1574, %v1609
        %v1615 = vadd.f32 %v1575, %v1611
        %v1616 = vlaneseq
        %v1617 = vshrl.u32 %v1616, 7
        %v1618 = vsub.s32 6, %v1617
        %v1619 = vrot.slane %v357, %v1618
        %1621 = vrot.lane.b32.xlu0 %v1619, 12
        %v1622 = vpop.permute.xlu0 %1621
        %v1624 = vmul.f32 %v1534, %v1622
        %v1625 = vmul.f32 %v1535, %v1622
        %1628 = vrot.lane.b32.xlu0 %v1624, 116
        %v1629 = vpop.permute.xlu0 %1628
        %1630 = vrot.lane.b32.xlu0 %v1625, 116
        %v1631 = vpop.permute.xlu0 %1630
        %v1634 = vadd.f32 %v1594, %v1629
        %v1635 = vadd.f32 %v1595, %v1631
        %v1636 = vlaneseq
        %v1637 = vshrl.u32 %v1636, 7
        %v1638 = vsub.s32 6, %v1637
        %v1639 = vrot.slane %v351, %v1638
        %1641 = vrot.lane.b32.xlu0 %v1639, 12
        %v1642 = vpop.permute.xlu0 %1641
        %v1644 = vmul.f32 %v1534, %v1642
        %v1645 = vmul.f32 %v1535, %v1642
        %1648 = vrot.lane.b32.xlu0 %v1644, 120
        %v1649 = vpop.permute.xlu0 %1648
        %1650 = vrot.lane.b32.xlu0 %v1645, 120
        %v1651 = vpop.permute.xlu0 %1650
        %v1654 = vadd.f32 %v1614, %v1649
        %v1655 = vadd.f32 %v1615, %v1651
        %v1656 = vlaneseq
        %v1657 = vshrl.u32 %v1656, 7
        %v1658 = vsub.s32 7, %v1657
        %v1659 = vrot.slane %v357, %v1658
        %1661 = vrot.lane.b32.xlu0 %v1659, 16
        %v1662 = vpop.permute.xlu0 %1661
        %v1664 = vmul.f32 %v1534, %v1662
        %v1665 = vmul.f32 %v1535, %v1662
        %1668 = vrot.lane.b32.xlu0 %v1664, 112
        %v1669 = vpop.permute.xlu0 %1668
        %1670 = vrot.lane.b32.xlu0 %v1665, 112
        %v1671 = vpop.permute.xlu0 %1670
        %v1674 = vadd.f32 %v1634, %v1669
        %v1675 = vadd.f32 %v1635, %v1671
        %v1676 = vlaneseq
        %v1677 = vshrl.u32 %v1676, 7
        %v1678 = vsub.s32 7, %v1677
        %v1679 = vrot.slane %v351, %v1678
        %1681 = vrot.lane.b32.xlu0 %v1679, 16
        %v1682 = vpop.permute.xlu0 %1681
        %v1684 = vmul.f32 %v1534, %v1682
        %v1685 = vmul.f32 %v1535, %v1682
        %1688 = vrot.lane.b32.xlu0 %v1684, 116
        %v1689 = vpop.permute.xlu0 %1688
        %1690 = vrot.lane.b32.xlu0 %v1685, 116
        %v1691 = vpop.permute.xlu0 %1690
        %v1694 = vadd.f32 %v1654, %v1689
        %v1695 = vadd.f32 %v1655, %v1691
        %v1696 = vlaneseq
        %v1697 = vshrl.u32 %v1696, 7
        %v1698 = vsub.s32 0, %v1697
        %v1699 = vrot.slane %v358, %v1698
        %1701 = vrot.lane.b32.xlu0 %v1699, 20
        %v1702 = vpop.permute.xlu0 %1701
        %v1704 = vmul.f32 %v1534, %v1702
        %v1705 = vmul.f32 %v1535, %v1702
        %1708 = vrot.lane.b32.xlu0 %v1704, 108
        %v1709 = vpop.permute.xlu0 %1708
        %1710 = vrot.lane.b32.xlu0 %v1705, 108
        %v1711 = vpop.permute.xlu0 %1710
        %v1714 = vadd.f32 %v1674, %v1709
        %v1715 = vadd.f32 %v1675, %v1711
        %v1716 = vlaneseq
        %v1717 = vshrl.u32 %v1716, 7
        %v1718 = vsub.s32 0, %v1717
        %v1719 = vrot.slane %v352, %v1718
        %1721 = vrot.lane.b32.xlu0 %v1719, 20
        %v1722 = vpop.permute.xlu0 %1721
        %v1724 = vmul.f32 %v1534, %v1722
        %v1725 = vmul.f32 %v1535, %v1722
        %1728 = vrot.lane.b32.xlu0 %v1724, 112
        %v1729 = vpop.permute.xlu0 %1728
        %1730 = vrot.lane.b32.xlu0 %v1725, 112
        %v1731 = vpop.permute.xlu0 %1730
        %v1734 = vadd.f32 %v1694, %v1729
        %v1735 = vadd.f32 %v1695, %v1731
        %v1736 = vlaneseq
        %v1737 = vshrl.u32 %v1736, 7
        %v1738 = vsub.s32 1, %v1737
        %v1739 = vrot.slane %v358, %v1738
        %1741 = vrot.lane.b32.xlu0 %v1739, 24
        %v1742 = vpop.permute.xlu0 %1741
        %v1744 = vmul.f32 %v1534, %v1742
        %v1745 = vmul.f32 %v1535, %v1742
        %1748 = vrot.lane.b32.xlu0 %v1744, 104
        %v1749 = vpop.permute.xlu0 %1748
        %1750 = vrot.lane.b32.xlu0 %v1745, 104
        %v1751 = vpop.permute.xlu0 %1750
        %v1754 = vadd.f32 %v1714, %v1749
        %v1755 = vadd.f32 %v1715, %v1751
        %v1756 = vld [vmem:[%s345 + $0x6] sm:$0xff]
        %v1757 = vld [vmem:[%s345 + $0xe] sm:$0xff]
        %v1758 = vlaneseq
        %v1759 = vshrl.u32 %v1758, 7
        %v1760 = vsub.s32 2, %v1759
        %v1761 = vrot.slane %v358, %v1760
        %v1762 = vmul.f32 %v1756, %v1761
        %v1763 = vmul.f32 %v1757, %v1761
        %v1764 = vadd.f32 %v1754, %v1762
        %v1765 = vadd.f32 %v1755, %v1763
        %v1766 = vlaneseq
        %v1767 = vshrl.u32 %v1766, 7
        %v1768 = vsub.s32 3, %v1767
        %v1769 = vrot.slane %v358, %v1768
        %1771 = vrot.lane.b32.xlu0 %v1769, 4
        %v1772 = vpop.permute.xlu0 %1771
        %v1774 = vmul.f32 %v1756, %v1772
        %v1775 = vmul.f32 %v1757, %v1772
        %1778 = vrot.lane.b32.xlu0 %v1774, 124
        %v1779 = vpop.permute.xlu0 %1778
        %1780 = vrot.lane.b32.xlu0 %v1775, 124
        %v1781 = vpop.permute.xlu0 %1780
        %v1784 = vadd.f32 %v1764, %v1779
        %v1785 = vadd.f32 %v1765, %v1781
        %v1786 = vlaneseq
        %v1787 = vshrl.u32 %v1786, 7
        %v1788 = vsub.s32 4, %v1787
        %v1789 = vrot.slane %v358, %v1788
        %1791 = vrot.lane.b32.xlu0 %v1789, 8
        %v1792 = vpop.permute.xlu0 %1791
        %v1794 = vmul.f32 %v1756, %v1792
        %v1795 = vmul.f32 %v1757, %v1792
        %1798 = vrot.lane.b32.xlu0 %v1794, 120
        %v1799 = vpop.permute.xlu0 %1798
        %1800 = vrot.lane.b32.xlu0 %v1795, 120
        %v1801 = vpop.permute.xlu0 %1800
        %v1804 = vadd.f32 %v1784, %v1799
        %v1805 = vadd.f32 %v1785, %v1801
        %v1806 = vlaneseq
        %v1807 = vshrl.u32 %v1806, 7
        %v1808 = vsub.s32 5, %v1807
        %v1809 = vrot.slane %v358, %v1808
        %1811 = vrot.lane.b32.xlu0 %v1809, 12
        %v1812 = vpop.permute.xlu0 %1811
        %v1814 = vmul.f32 %v1756, %v1812
        %v1815 = vmul.f32 %v1757, %v1812
        %1818 = vrot.lane.b32.xlu0 %v1814, 116
        %v1819 = vpop.permute.xlu0 %1818
        %1820 = vrot.lane.b32.xlu0 %v1815, 116
        %v1821 = vpop.permute.xlu0 %1820
        %v1824 = vadd.f32 %v1804, %v1819
        %v1825 = vadd.f32 %v1805, %v1821
        %v1826 = vlaneseq
        %v1827 = vshrl.u32 %v1826, 7
        %v1828 = vsub.s32 6, %v1827
        %v1829 = vrot.slane %v358, %v1828
        %1831 = vrot.lane.b32.xlu0 %v1829, 16
        %v1832 = vpop.permute.xlu0 %1831
        %v1834 = vmul.f32 %v1756, %v1832
        %v1835 = vmul.f32 %v1757, %v1832
        %1838 = vrot.lane.b32.xlu0 %v1834, 112
        %v1839 = vpop.permute.xlu0 %1838
        %1840 = vrot.lane.b32.xlu0 %v1835, 112
        %v1841 = vpop.permute.xlu0 %1840
        %v1844 = vadd.f32 %v1824, %v1839
        %v1845 = vadd.f32 %v1825, %v1841
        %v1846 = vlaneseq
        %v1847 = vshrl.u32 %v1846, 7
        %v1848 = vsub.s32 7, %v1847
        %v1849 = vrot.slane %v358, %v1848
        %1851 = vrot.lane.b32.xlu0 %v1849, 20
        %v1852 = vpop.permute.xlu0 %1851
        %v1854 = vmul.f32 %v1756, %v1852
        %v1855 = vmul.f32 %v1757, %v1852
        %1858 = vrot.lane.b32.xlu0 %v1854, 108
        %v1859 = vpop.permute.xlu0 %1858
        %1860 = vrot.lane.b32.xlu0 %v1855, 108
        %v1861 = vpop.permute.xlu0 %1860
        %v1864 = vadd.f32 %v1844, %v1859
        %v1865 = vadd.f32 %v1845, %v1861
        %v1866 = vlaneseq
        %v1867 = vshrl.u32 %v1866, 7
        %v1868 = vsub.s32 0, %v1867
        %v1869 = vrot.slane %v359, %v1868
        %1871 = vrot.lane.b32.xlu0 %v1869, 24
        %v1872 = vpop.permute.xlu0 %1871
        %v1874 = vmul.f32 %v1756, %v1872
        %v1875 = vmul.f32 %v1757, %v1872
        %1878 = vrot.lane.b32.xlu0 %v1874, 104
        %v1879 = vpop.permute.xlu0 %1878
        %1880 = vrot.lane.b32.xlu0 %v1875, 104
        %v1881 = vpop.permute.xlu0 %1880
        %v1884 = vadd.f32 %v1864, %v1879
        %v1885 = vadd.f32 %v1865, %v1881
        %v1886 = vld [vmem:[%s2] sm:$0x1]
        %v1888 = vlaneseq
        %v1889 = vshrl.u32 %v1888, 7
        %v1890 = vsub.s32 0, %v1889
        %v1891 = vrot.slane %v1886, %v1890
        %1892 = vrot.lane.b32.xlu0 %v1891, 8
        %v1893 = vpop.permute.xlu0 %1892
        %v1895 = vadd.f32 %v1472, %v1893
        %v1896 = vadd.f32 %v1473, %v1893
        %v1897 = vmax.f32 %v1895, 0.0
        %v1898 = vmax.f32 %v1896, 0.0
        %v1899 = vld [vmem:[%s4] sm:$0x1]
        %v1901 = vlaneseq
        %v1902 = vshrl.u32 %v1901, 7
        %v1903 = vsub.s32 0, %v1902
        %v1904 = vrot.slane %v1899, %v1903
        %1905 = vrot.lane.b32.xlu0 %v1904, 4
        %v1906 = vpop.permute.xlu0 %1905
        %v1908 = vadd.f32 %v1734, %v1906
        %v1909 = vadd.f32 %v1735, %v1906
        %v1910 = vmax.f32 %v1908, 0.0
        %v1911 = vmax.f32 %v1909, 0.0
        %1914 = vrot.lane.b32.xlu0 %v1910, 4
        %v1915 = vpop.permute.xlu0 %1914
        %1916 = vrot.lane.b32.xlu0 %v1911, 4
        %v1917 = vpop.permute.xlu0 %1916
        %v1920 = vadd.f32 %v1897, %v1915
        %v1921 = vadd.f32 %v1898, %v1917
        %v1922 = vld [vmem:[%s6] sm:$0x1]
        %v1924 = vlaneseq
        %v1925 = vshrl.u32 %v1924, 7
        %v1926 = vsub.s32 0, %v1925
        %v1927 = vrot.slane %v1922, %v1926
        %v1929 = vadd.f32 %v1884, %v1927
        %v1930 = vadd.f32 %v1885, %v1927
        %v1931 = vmax.f32 %v1929, 0.0
        %v1932 = vmax.f32 %v1930, 0.0
        %1935 = vrot.lane.b32.xlu0 %v1931, 8
        %v1936 = vpop.permute.xlu0 %1935
        %1937 = vrot.lane.b32.xlu0 %v1932, 8
        %v1938 = vpop.permute.xlu0 %1937
        %v1941 = vadd.f32 %v1920, %v1936
        %v1942 = vadd.f32 %v1921, %v1938
        %1945 = vrot.lane.b32.xlu0 %v986, 124
        %v1946 = vpop.permute.xlu0 %1945
        %1947 = vrot.lane.b32.xlu0 %v987, 124
        %v1948 = vpop.permute.xlu0 %1947
        %v1951 = vadd.f32 %v1941, %v1946
        %v1952 = vadd.f32 %v1942, %v1948
        %vm1953 = vcmask 581632
        %1954 = vst.msk [vmem:[#allocation2] sm:$0x1] %vm1953, 0.0
        %1955 = vst.msk [vmem:[#allocation2 + $0x11] sm:$0x1] %vm1953, 0.0
        %1958 = vrot.lane.b32.xlu0 %v1951, 120
        %v1959 = vpop.permute.xlu0 %1958
        %1960 = vrot.lane.b32.xlu0 %v1952, 120
        %v1961 = vpop.permute.xlu0 %1960
        %vm1964 = vcmask 588800
        %1965 = vst.msk [vmem:[#allocation2 + $0x1] sm:$0xff] %vm1964, %v1959
        %1966 = vst.msk [vmem:[#allocation2 + $0x9] sm:$0xff] %vm1964, %v1961
        %v1967 = vld [vmem:[%s8] sm:$0x3]
        %v1969 = vlaneseq
        %v1970 = vshrl.u32 %v1969, 7
        %v1971 = vsub.s32 0, %v1970
        %v1972 = vrot.slane %v1967, %v1971
        %v1973 = vlaneseq
        %v1974 = vshrl.u32 %v1973, 7
        %v1975 = vsub.s32 1, %v1974
        %v1976 = vrot.slane %v1967, %v1975
        %v1979 = vld [vmem:[#allocation2] sm:$0xff]
        %v1980 = vld [vmem:[#allocation2 + $0x8] sm:$0xff]
        %v1981 = vpack.c.bf16 %v1980, %v1979
        %v1982 = vld [vmem:[#allocation3] sm:$0xff]
        %v1983 = vld [vmem:[#allocation3 + $0x8] sm:$0xff]
        %v1984 = vld [vmem:[#allocation3 + $0x10] sm:$0xff]
        %v1985 = vld [vmem:[#allocation3 + $0x18] sm:$0xff]
        %v1986 = vld [vmem:[#allocation3 + $0x20] sm:$0xff]
        %v1987 = vld [vmem:[#allocation3 + $0x28] sm:$0xff]
        %v1988 = vld [vmem:[#allocation3 + $0x30] sm:$0xff]
        %v1989 = vld [vmem:[#allocation3 + $0x38] sm:$0xff]
        %v1990 = vld [vmem:[#allocation3 + $0x40] sm:$0xff]
        %v2000 = vunpack.c.l.b16 %v1982
        %v2001 = vunpack.c.h.b16 %v1982
        %v2002 = vunpack.c.l.b16 %v1983
        %v2003 = vunpack.c.h.b16 %v1983
        %v2004 = vunpack.c.l.b16 %v1984
        %v2005 = vunpack.c.h.b16 %v1984
        %v2006 = vunpack.c.l.b16 %v1985
        %v2007 = vunpack.c.h.b16 %v1985
        %v2008 = vunpack.c.l.b16 %v1986
        %v2009 = vunpack.c.h.b16 %v1986
        %v2010 = vunpack.c.l.b16 %v1987
        %v2011 = vunpack.c.h.b16 %v1987
        %v2012 = vunpack.c.l.b16 %v1988
        %v2013 = vunpack.c.h.b16 %v1988
        %v2014 = vunpack.c.l.b16 %v1989
        %v2015 = vunpack.c.h.b16 %v1989
        %v2016 = vunpack.c.l.b16 %v1990
        %v2017 = vunpack.c.h.b16 %v1990
        %v2018 = vpack.c.b16 %v2002, %v2000
        %v2019 = vpack.c.b16 %v2003, %v2001
        %v2020 = vpack.c.b16 %v2006, %v2004
        %v2021 = vpack.c.b16 %v2007, %v2005
        %v2022 = vpack.c.b16 %v2010, %v2008
        %v2023 = vpack.c.b16 %v2011, %v2009
        %v2024 = vpack.c.b16 %v2014, %v2012
        %v2025 = vpack.c.b16 %v2015, %v2013
        %v2026 = vpack.c.b16 %v2016, %v2016
        %v2027 = vpack.c.b16 %v2017, %v2017
        %v2037 = vsel %vm1964, %v1981, 0
        %vm2039 = vcmask 1043456
        %v2041 = vsel %vm2039, %v2026, 0
        %v2044 = vsel %vm2039, %v2027, 0
        %2046 = vmatprep.subr.bf16.mxu0 %v2019
        %2047 = vmatpush1.bf16.msra.mxu0 %v2018
        %2048 = vmatprep.subr.bf16.mxu0 %v2021
        %2049 = vmatpush1.bf16.msra.mxu0 %v2020
        %2050 = vmatprep.subr.bf16.mxu0 %v2023
        %2051 = vmatpush1.bf16.msra.mxu0 %v2022
        %2052 = vmatprep.subr.bf16.mxu0 %v2025
        %2053 = vmatpush1.bf16.msra.mxu0 %v2024
        %2054 = vmatprep.subr.bf16.mxu0 %v2044
        %2055 = vmatpush1.bf16.msra.mxu0 %v2041
        %2056 = vmatprep.subr.bf16.mxu0 0
        %2057 = vmatpush1.bf16.msra.mxu0 0
        %2058 = vmatprep.subr.bf16.mxu0 0
        %2059 = vmatpush1.bf16.msra.mxu0 0
        %2060 = vmatprep.subr.bf16.mxu0 0
        %2061 = vmatpush1.bf16.msra.mxu0 0
        %2062 = vmatprep.subr.bf16.mxu0 0
        %2063 = vmatpush1.bf16.msra.mxu0 0
        %2064 = vmatprep.subr.bf16.mxu0 0
        %2065 = vmatpush1.bf16.msra.mxu0 0
        %2066 = vmatprep.subr.bf16.mxu0 0
        %2067 = vmatpush1.bf16.msra.mxu0 0
        %2068 = vmatprep.subr.bf16.mxu0 0
        %2069 = vmatpush1.bf16.msra.mxu0 0
        %2070 = vmatprep.subr.bf16.mxu0 0
        %2071 = vmatpush1.bf16.msra.mxu0 0
        %2072 = vmatprep.subr.bf16.mxu0 0
        %2073 = vmatpush1.bf16.msra.mxu0 0
        %2074 = vmatprep.subr.bf16.mxu0 0
        %2075 = vmatpush1.bf16.msra.mxu0 0
        %2076 = vmatprep.subr.bf16.mxu0 0
        %2077 = vmatpush1.bf16.msra.mxu0 0
        %2078 = vmatprep.mubr.bf16.mxu0 0
        %2079 = vmatmul.mubr.bf16.gmra.mrb[0].mxu0 %v2037
        %v2080 = vpop.f32.mrb[0].mxu0
        %v2081 = vadd.f32 0.0, %v2080
        %v2082 = vpop.f32.mrb[0].mxu0
        %v2083 = vadd.f32 0.0, %v2082
        %v2084 = vpop.f32.mrb[0].mxu0
        %v2085 = vadd.f32 0.0, %v2084
        %v2086 = vpop.f32.mrb[0].mxu0
        %v2087 = vadd.f32 0.0, %v2086
        %2088 = vdwg.mxu0
        %v2089 = vadd.f32 %v1972, %v2081
        %v2090 = vadd.f32 %v1976, %v2083
        %v2091 = vadd.f32 %v1972, %v2085
        %v2092 = vadd.f32 %v1976, %v2087
        %v2093 = vld [vmem:[#allocation2 + $0x1] sm:$0xff]
        %v2094 = vld [vmem:[#allocation2 + $0x9] sm:$0xff]
        %v2095 = vpack.c.bf16 %v2094, %v2093
        %s2096 = scalar_lea.vmem [#allocation3], 72
        %v2097 = vld [vmem:[%s2096] sm:$0xff]
        %v2098 = vld [vmem:[%s2096 + $0x8] sm:$0xff]
        %v2099 = vld [vmem:[%s2096 + $0x10] sm:$0xff]
        %v2100 = vld [vmem:[%s2096 + $0x18] sm:$0xff]
        %v2101 = vld [vmem:[%s2096 + $0x20] sm:$0xff]
        %v2102 = vld [vmem:[%s2096 + $0x28] sm:$0xff]
        %v2103 = vld [vmem:[%s2096 + $0x30] sm:$0xff]
        %v2104 = vld [vmem:[%s2096 + $0x38] sm:$0xff]
        %v2105 = vld [vmem:[%s2096 + $0x40] sm:$0xff]
        %v2115 = vunpack.c.l.b16 %v2097
        %v2116 = vunpack.c.h.b16 %v2097
        %v2117 = vunpack.c.l.b16 %v2098
        %v2118 = vunpack.c.h.b16 %v2098
        %v2119 = vunpack.c.l.b16 %v2099
        %v2120 = vunpack.c.h.b16 %v2099
        %v2121 = vunpack.c.l.b16 %v2100
        %v2122 = vunpack.c.h.b16 %v2100
        %v2123 = vunpack.c.l.b16 %v2101
        %v2124 = vunpack.c.h.b16 %v2101
        %v2125 = vunpack.c.l.b16 %v2102
        %v2126 = vunpack.c.h.b16 %v2102
        %v2127 = vunpack.c.l.b16 %v2103
        %v2128 = vunpack.c.h.b16 %v2103
        %v2129 = vunpack.c.l.b16 %v2104
        %v2130 = vunpack.c.h.b16 %v2104
        %v2131 = vunpack.c.l.b16 %v2105
        %v2132 = vunpack.c.h.b16 %v2105
        %v2133 = vpack.c.b16 %v2117, %v2115
        %v2134 = vpack.c.b16 %v2118, %v2116
        %v2135 = vpack.c.b16 %v2121, %v2119
        %v2136 = vpack.c.b16 %v2122, %v2120
        %v2137 = vpack.c.b16 %v2125, %v2123
        %v2138 = vpack.c.b16 %v2126, %v2124
        %v2139 = vpack.c.b16 %v2129, %v2127
        %v2140 = vpack.c.b16 %v2130, %v2128
        %v2141 = vpack.c.b16 %v2131, %v2131
        %v2142 = vpack.c.b16 %v2132, %v2132
        %v2152 = vsel %vm1964, %v2095, 0
        %v2155 = vsel %vm2039, %v2141, 0
        %v2158 = vsel %vm2039, %v2142, 0
        %2160 = vmatprep.subr.bf16.mxu0 %v2134
        %2161 = vmatpush1.bf16.msra.mxu0 %v2133
        %2162 = vmatprep.subr.bf16.mxu0 %v2136
        %2163 = vmatpush1.bf16.msra.mxu0 %v2135
        %2164 = vmatprep.subr.bf16.mxu0 %v2138
        %2165 = vmatpush1.bf16.msra.mxu0 %v2137
        %2166 = vmatprep.subr.bf16.mxu0 %v2140
        %2167 = vmatpush1.bf16.msra.mxu0 %v2139
        %2168 = vmatprep.subr.bf16.mxu0 %v2158
        %2169 = vmatpush1.bf16.msra.mxu0 %v2155
        %2170 = vmatprep.subr.bf16.mxu0 0
        %2171 = vmatpush1.bf16.msra.mxu0 0
        %2172 = vmatprep.subr.bf16.mxu0 0
        %2173 = vmatpush1.bf16.msra.mxu0 0
        %2174 = vmatprep.subr.bf16.mxu0 0
        %2175 = vmatpush1.bf16.msra.mxu0 0
        %2176 = vmatprep.subr.bf16.mxu0 0
        %2177 = vmatpush1.bf16.msra.mxu0 0
        %2178 = vmatprep.subr.bf16.mxu0 0
        %2179 = vmatpush1.bf16.msra.mxu0 0
        %2180 = vmatprep.subr.bf16.mxu0 0
        %2181 = vmatpush1.bf16.msra.mxu0 0
        %2182 = vmatprep.subr.bf16.mxu0 0
        %2183 = vmatpush1.bf16.msra.mxu0 0
        %2184 = vmatprep.subr.bf16.mxu0 0
        %2185 = vmatpush1.bf16.msra.mxu0 0
        %2186 = vmatprep.subr.bf16.mxu0 0
        %2187 = vmatpush1.bf16.msra.mxu0 0
        %2188 = vmatprep.subr.bf16.mxu0 0
        %2189 = vmatpush1.bf16.msra.mxu0 0
        %2190 = vmatprep.subr.bf16.mxu0 0
        %2191 = vmatpush1.bf16.msra.mxu0 0
        %2192 = vmatprep.mubr.bf16.mxu0 0
        %2193 = vmatmul.mubr.bf16.gmra.mrb[0].mxu0 %v2152
        %v2194 = vpop.f32.mrb[0].mxu0
        %v2195 = vadd.f32 0.0, %v2194
        %v2196 = vpop.f32.mrb[0].mxu0
        %v2197 = vadd.f32 0.0, %v2196
        %v2198 = vpop.f32.mrb[0].mxu0
        %v2199 = vadd.f32 0.0, %v2198
        %v2200 = vpop.f32.mrb[0].mxu0
        %v2201 = vadd.f32 0.0, %v2200
        %2202 = vdwg.mxu0
        %v2203 = vadd.f32 %v2089, %v2195
        %v2204 = vadd.f32 %v2090, %v2197
        %v2205 = vadd.f32 %v2091, %v2199
        %v2206 = vadd.f32 %v2092, %v2201
        %v2207 = vld [vmem:[#allocation2 + $0x2] sm:$0xff]
        %v2208 = vld [vmem:[#allocation2 + $0xa] sm:$0xff]
        %v2209 = vpack.c.bf16 %v2208, %v2207
        %s2210 = scalar_lea.vmem [#allocation3], 144
        %v2211 = vld [vmem:[%s2210] sm:$0xff]
        %v2212 = vld [vmem:[%s2210 + $0x8] sm:$0xff]
        %v2213 = vld [vmem:[%s2210 + $0x10] sm:$0xff]
        %v2214 = vld [vmem:[%s2210 + $0x18] sm:$0xff]
        %v2215 = vld [vmem:[%s2210 + $0x20] sm:$0xff]
        %v2216 = vld [vmem:[%s2210 + $0x28] sm:$0xff]
        %v2217 = vld [vmem:[%s2210 + $0x30] sm:$0xff]
        %v2218 = vld [vmem:[%s2210 + $0x38] sm:$0xff]
        %v2219 = vld [vmem:[%s2210 + $0x40] sm:$0xff]
        %v2229 = vunpack.c.l.b16 %v2211
        %v2230 = vunpack.c.h.b16 %v2211
        %v2231 = vunpack.c.l.b16 %v2212
        %v2232 = vunpack.c.h.b16 %v2212
        %v2233 = vunpack.c.l.b16 %v2213
        %v2234 = vunpack.c.h.b16 %v2213
        %v2235 = vunpack.c.l.b16 %v2214
        %v2236 = vunpack.c.h.b16 %v2214
        %v2237 = vunpack.c.l.b16 %v2215
        %v2238 = vunpack.c.h.b16 %v2215
        %v2239 = vunpack.c.l.b16 %v2216
        %v2240 = vunpack.c.h.b16 %v2216
        %v2241 = vunpack.c.l.b16 %v2217
        %v2242 = vunpack.c.h.b16 %v2217
        %v2243 = vunpack.c.l.b16 %v2218
        %v2244 = vunpack.c.h.b16 %v2218
        %v2245 = vunpack.c.l.b16 %v2219
        %v2246 = vunpack.c.h.b16 %v2219
        %v2247 = vpack.c.b16 %v2231, %v2229
        %v2248 = vpack.c.b16 %v2232, %v2230
        %v2249 = vpack.c.b16 %v2235, %v2233
        %v2250 = vpack.c.b16 %v2236, %v2234
        %v2251 = vpack.c.b16 %v2239, %v2237
        %v2252 = vpack.c.b16 %v2240, %v2238
        %v2253 = vpack.c.b16 %v2243, %v2241
        %v2254 = vpack.c.b16 %v2244, %v2242
        %v2255 = vpack.c.b16 %v2245, %v2245
        %v2256 = vpack.c.b16 %v2246, %v2246
        %v2266 = vsel %vm1964, %v2209, 0
        %v2269 = vsel %vm2039, %v2255, 0
        %v2272 = vsel %vm2039, %v2256, 0
        %2274 = vmatprep.subr.bf16.mxu0 %v2248
        %2275 = vmatpush1.bf16.msra.mxu0 %v2247
        %2276 = vmatprep.subr.bf16.mxu0 %v2250
        %2277 = vmatpush1.bf16.msra.mxu0 %v2249
        %2278 = vmatprep.subr.bf16.mxu0 %v2252
        %2279 = vmatpush1.bf16.msra.mxu0 %v2251
        %2280 = vmatprep.subr.bf16.mxu0 %v2254
        %2281 = vmatpush1.bf16.msra.mxu0 %v2253
        %2282 = vmatprep.subr.bf16.mxu0 %v2272
        %2283 = vmatpush1.bf16.msra.mxu0 %v2269
        %2284 = vmatprep.subr.bf16.mxu0 0
        %2285 = vmatpush1.bf16.msra.mxu0 0
        %2286 = vmatprep.subr.bf16.mxu0 0
        %2287 = vmatpush1.bf16.msra.mxu0 0
        %2288 = vmatprep.subr.bf16.mxu0 0
        %2289 = vmatpush1.bf16.msra.mxu0 0
        %2290 = vmatprep.subr.bf16.mxu0 0
        %2291 = vmatpush1.bf16.msra.mxu0 0
        %2292 = vmatprep.subr.bf16.mxu0 0
        %2293 = vmatpush1.bf16.msra.mxu0 0
        %2294 = vmatprep.subr.bf16.mxu0 0
        %2295 = vmatpush1.bf16.msra.mxu0 0
        %2296 = vmatprep.subr.bf16.mxu0 0
        %2297 = vmatpush1.bf16.msra.mxu0 0
        %2298 = vmatprep.subr.bf16.mxu0 0
        %2299 = vmatpush1.bf16.msra.mxu0 0
        %2300 = vmatprep.subr.bf16.mxu0 0
        %2301 = vmatpush1.bf16.msra.mxu0 0
        %2302 = vmatprep.subr.bf16.mxu0 0
        %2303 = vmatpush1.bf16.msra.mxu0 0
        %2304 = vmatprep.subr.bf16.mxu0 0
        %2305 = vmatpush1.bf16.msra.mxu0 0
        %2306 = vmatprep.mubr.bf16.mxu0 0
        %2307 = vmatmul.mubr.bf16.gmra.mrb[0].mxu0 %v2266
        %v2308 = vpop.f32.mrb[0].mxu0
        %v2309 = vadd.f32 0.0, %v2308
        %v2310 = vpop.f32.mrb[0].mxu0
        %v2311 = vadd.f32 0.0, %v2310
        %v2312 = vpop.f32.mrb[0].mxu0
        %v2313 = vadd.f32 0.0, %v2312
        %v2314 = vpop.f32.mrb[0].mxu0
        %v2315 = vadd.f32 0.0, %v2314
        %2316 = vdwg.mxu0
        %v2317 = vadd.f32 %v2203, %v2309
        %v2318 = vadd.f32 %v2204, %v2311
        %v2319 = vadd.f32 %v2205, %v2313
        %v2320 = vadd.f32 %v2206, %v2315
        %v2321 = vmax.f32 %v2317, 0.0
        %v2322 = vmax.f32 %v2319, 0.0
        %v2323 = vxor.u32 %v2318, 2147483648
        %v2324 = vxor.u32 %v2320, 2147483648
        %v2325 = vmul.f32 %v2323, 1.442695
        %v2326 = vpow.pop %v2325
        %v2327 = vmul.f32 %v2324, 1.442695
        %v2328 = vpow.pop %v2327
        %v2329 = vadd.f32 %v2326, 1.0
        %v2330 = vadd.f32 %v2328, 1.0
        %v2331 = vrcp.pop %v2329
        %v2332 = vmul.f32 1.0, %v2331
        %v2333 = vrcp.pop %v2330
        %v2334 = vmul.f32 1.0, %v2333
        %v2335 = vmul.f32 %v2321, %v2332
        %v2336 = vmul.f32 %v2322, %v2334
        %2337 = vst [vmem:[%s340] sm:$0xff] %v2335
        %2338 = vst [vmem:[%s340 + $0x8] sm:$0xff] %v2336
        %s2339 = sand.u32 %s226, 1
        %s2340 = scalar_lea.sflag [#allocation5], %s2339
        %s2341 = sand.u32 %s226, 1
        %s2342 = smul.addr %s2341, 16
        %s2343 = scalar_lea.vmem [#allocation6], %s2342
        // Predicated region
        $region61: #{tpu_custom_call.1} parent=55 // pred_check
          %p2344 = pneg %p236
        $region62: #{tpu_custom_call.1} parent=55 // pred_check_branch
          %2346 = sbr.rel (%p2344) target = $region64
        $region63: #{tpu_custom_call.1} parent=55 // pred_region
          %s2348 = ssub.s32 256, 256
          %2349 = vsyncadd %s2340, %s2348
          %s2350 = smul.addr %s24, 2
          %s2351 = smul.addr %s2350, 128
          %s2352 = scalar_lea.hbm %s9, %s2351
          %s2353 = sshll.u32 %s2343, 4
          %s2354 = int_to_ptr.vmem [resolvable:$true] %s2353
          %2359 = dma.vmem_to_hbm [thread:$0]  %s2354, 256, %s2352, %s2340, 128, 128, 8
        $region64: #{tpu_custom_call.1} parent=55 // pred_fallthru
          _
      $region56: #{tpu_custom_call.1} parent=5 // pred_fallthru
        _
      %p2360 = scmp.le.s32.totalorder 2, %s19
      // Predicated region
      $region65: #{tpu_custom_call.1} parent=5 // pred_check
        %p2361 = pneg %p2360
      $region66: #{tpu_custom_call.1} parent=5 // pred_check_branch
        %2363 = sbr.rel (%p2361) target = $region68
      $region67: #{tpu_custom_call.1} parent=5 // pred_region
        %s2364 = ssub.s32 %s19, 2
        // Predicated region
        $region69: #{tpu_custom_call.1} parent=67 // pred_check
          %p2365 = pneg %p242
        $region70: #{tpu_custom_call.1} parent=67 // pred_check_branch
          %2367 = sbr.rel (%p2365) target = $region72
        $region71: #{tpu_custom_call.1} parent=67 // pred_region
          %s2368 = sand.u32 %s227, 1
          %s2369 = scalar_lea.sflag [#allocation5], %s2368
          %s2370 = sand.u32 %s227, 1
          %s2371 = smul.addr %s2370, 16
          %s2372 = scalar_lea.vmem [#allocation6], %s2371
          %2373 = dma.done %s2369, 256
        $region72: #{tpu_custom_call.1} parent=67 // pred_fallthru
          _
      $region68: #{tpu_custom_call.1} parent=5 // pred_fallthru
        _
    $region6: #{tpu_custom_call.1} parent=1 // loop_footer
      %s23 = sadd.s32 1, %s19
    $region7: #{tpu_custom_call.1} parent=1 // loop_footer_branch
      %18 = sbr.rel target = $region3
    $region8: #{tpu_custom_call.1} parent=1 // loop_exit
      _
    %2374 = vsyncpa [#allocation4], 1
    %s2375 = scalar_lea.sflag [#allocation4], 1
    %2376 = vsyncpa %s2375, 1
    %2377 = vsyncpa [#allocation5], 1
    %s2378 = scalar_lea.sflag [#allocation5], 1
    %2379 = vsyncpa %s2378, 1

</llo_original>
